<compile_context>
chip_gen: v5e
topology: v5e:2x2
jax: 0.10.0
libtpu: 0.0.40
codegen_flags: <defaults>
</compile_context>

<pallas_src>
import functools

import jax
import jax.numpy as jnp
from jax.experimental import pallas as pl
from jax.experimental.pallas import tpu as pltpu

F32 = jnp.float32
BF16 = jnp.bfloat16


def _leaky(x, slope):
    return jnp.where(x >= 0, x, slope * x)


# ----------------------------------------------------------------------------
# Fused Pallas kernel: grid axis 0 = graph side (0 = s, 1 = t)
# ----------------------------------------------------------------------------
def gcngat_kernel(
    x_ref,        # [N, 1]   raw node features (this side)
    mask_ref,     # [N, N]   A + I  (0/1, bf16), mask[target, source]
    dinv_ref,     # [N, 1]   D^-1/2 of (A + I)
    p_ref,        # [B, N]   mean-pool matrix (scatter_mean)
    wg_ref, bg_ref,                 # GCNConv(1 -> 64):      W [1,64],  b [1,64]
    wa_ref, asrc_ref, adst_ref, ba_ref,  # GATConv(64 -> 64): W [64,64], a_* [1,64], b [1,64]
    w12_ref, b12_ref,               # aggregator mlp|mlp_gate fused: [64,64], [1,64]
    w3_ref, b3_ref,                 # aggregator mlp_final:  [32,48], [1,48]
    w4_ref, b4_ref,                 #                        [48,32], [1,32]
    wc1_ref, bc1_ref,               # classifier MLP(64,32,2, num_layers=3)
    wc2_ref, bc2_ref,
    wc3_ref, bc3_ref,
    out_ref,      # [B, 2]   logits (written at last grid step)
    emb_ref,      # scratch  [2, B, 32] per-side graph embeddings
):
    side = pl.program_id(0)

    @pl.when(side == 0)
    def _():
        out_ref[...] = jnp.zeros_like(out_ref)

    mask_f = mask_ref[...].astype(F32)          # 0/1 exactly representable in bf16
    dinv = dinv_ref[...]                        # [N, 1]

    # ---- GCNConv: D^-1/2 (A+I) D^-1/2 (X W) + b, with D^-1/2 folded into
    #      row/col scalings of the [N,64] feature tensor (no NxN a_gcn input).
    h0 = x_ref[...] * wg_ref[...]                                       # [N, 64] (in_channels==1)
    h = dinv * jnp.dot(mask_f, dinv * h0, preferred_element_type=F32) + bg_ref[...]

    # ---- GATConv (1 head, concat, negative_slope=0.2) ----
    hw = jnp.dot(h, wa_ref[...], preferred_element_type=F32)            # [N, 64]
    a_dst = jnp.sum(hw * adst_ref[...], axis=-1, keepdims=True)         # [N, 1]  (VPU + XLU)
    a_src = jax.lax.dot_general(                                        # [1, N]  (trans_b matmul)
        asrc_ref[...], hw, (((1,), (1,)), ((), ())),
        preferred_element_type=F32)
    e = _leaky(a_dst + a_src, 0.2)                                      # e[i, j] = dst_i + src_j
    e = jnp.where(mask_f > 0.0, e, jnp.float32(-1e30))
    pe = jnp.exp(e - jnp.max(e, axis=-1, keepdims=True)) * mask_f
    attn = pe * pl.reciprocal(jnp.sum(pe, axis=-1, keepdims=True), approx=True)
    h2 = jnp.dot(attn, hw, preferred_element_type=F32) + ba_ref[...]    # [N, 64]

    # ---- GraphAggregator (mlp & mlp_gate fused into one 64-wide matmul) ----
    sg = jnp.dot(h2, w12_ref[...], preferred_element_type=F32) + b12_ref[...]   # [N, 64]
    states = _leaky(sg[:, :32], 0.01)                                   # nn.LeakyReLU default slope
    g = sg[:, 32:]
    g = jnp.exp(g - jnp.max(g, axis=-1, keepdims=True))                 # softmax over feature dim
    g = g * pl.reciprocal(jnp.sum(g, axis=-1, keepdims=True), approx=True)
    s = states * g
    s = _leaky(jnp.dot(s, w3_ref[...], preferred_element_type=F32) + b3_ref[...], 0.01)
    s = jnp.dot(s, w4_ref[...], preferred_element_type=F32) + b4_ref[...]        # [N, 32]

    # ---- scatter_mean(x, batch, dim=0) as a pooling matmul ----
    emb_ref[side] = jnp.dot(p_ref[...], s, preferred_element_type=F32)           # [B, 32]

    # ---- classifier, fused in at the last grid step (needs both sides) ----
    # TODO(synk): PyG MLP default batch_norm layers are identity at init (eval mode); omitted.
    @pl.when(side == pl.num_programs(0) - 1)
    def _():
        z = jnp.concatenate([emb_ref[0], emb_ref[1]], axis=-1)                   # [B, 64]
        c = jnp.maximum(jnp.dot(z, wc1_ref[...], preferred_element_type=F32) + bc1_ref[...], 0.0)
        c = jnp.maximum(jnp.dot(c, wc2_ref[...], preferred_element_type=F32) + bc2_ref[...], 0.0)
        out_ref[...] = jnp.dot(c, wc3_ref[...], preferred_element_type=F32) + bc3_ref[...]


# ----------------------------------------------------------------------------
# Wrapper
# ----------------------------------------------------------------------------
def gcngat_pallas(x2, mask2, dinv2, pool2, params):
    """x2 [2,N,1] f32, mask2 [2,N,N] bf16, dinv2 [2,N,1] f32, pool2 [2,B,N] f32 -> [B,2] f32."""
    b = pool2.shape[1]

    # Fold aggregator mlp / mlp_gate into one weight; attention vectors as rows.
    w12 = jnp.concatenate([params["w1"], params["w2"]], axis=1)     # [64, 64]
    b12 = jnp.concatenate([params["b1"], params["b2"]], axis=1)     # [1, 64]
    a_src = params["a_src"].reshape(1, -1)                          # [1, 64]
    a_dst = params["a_dst"].reshape(1, -1)                          # [1, 64]

    weights = (
        params["wg"], params["bg"],
        params["wa"], a_src, a_dst, params["ba"],
        w12, b12, params["w3"], params["b3"], params["w4"], params["b4"],
        params["wc1"], params["bc1"], params["wc2"], params["bc2"],
        params["wc3"], params["bc3"],
    )

    def side_spec(arr):
        # block over the leading (side) axis; kernel sees the trailing 2-D view
        return pl.BlockSpec((pl.Squeezed(),) + arr.shape[1:], lambda s: (s, 0, 0))

    def const_spec(arr):
        # resident across both grid steps (constant block index -> fetched once)
        return pl.BlockSpec(arr.shape, lambda s: (0, 0))

    in_specs = (
        [side_spec(x2), side_spec(mask2), side_spec(dinv2), side_spec(pool2)]
        + [const_spec(w) for w in weights]
    )

    return pl.pallas_call(
        gcngat_kernel,
        out_shape=jax.ShapeDtypeStruct((b, 2), F32),
        grid=(2,),
        in_specs=in_specs,
        out_specs=pl.BlockSpec((b, 2), lambda s: (0, 0)),
        scratch_shapes=[pltpu.VMEM((2, b, 32), F32)],
        compiler_params=pltpu.CompilerParams(
            # side axis must be "arbitrary": the output block and the embedding
            # scratch are shared/revisited across the two steps.
            dimension_semantics=("arbitrary",),
        ),
    )(x2, mask2, dinv2, pool2, *weights)


# ----------------------------------------------------------------------------
# Graph -> dense glue (plain JAX)
# ----------------------------------------------------------------------------
def build_graph_operands(edge_index, batch, num_nodes, num_graphs):
    src, dst = edge_index[0], edge_index[1]                    # messages src -> dst
    a = jnp.zeros((num_nodes, num_nodes), F32).at[dst, src].set(1.0)
    a_loop = jnp.maximum(a, jnp.eye(num_nodes, dtype=F32))     # add self loops
    deg = jnp.sum(a_loop, axis=1)                              # in-degree incl. self loop
    dinv = jnp.where(deg > 0, jax.lax.rsqrt(deg), 0.0)[:, None]  # [N, 1]
    onehot = (batch[None, :] == jnp.arange(num_graphs)[:, None]).astype(F32)  # [B, N]
    counts = jnp.maximum(jnp.sum(onehot, axis=1, keepdims=True), 1.0)
    pool = onehot / counts
    return a_loop.astype(BF16), dinv, pool


@functools.partial(jax.jit, static_argnames=("num_graphs",))
def gcngat_forward(x_s, edge_index_s, batch_s, x_t, edge_index_t, batch_t, params,
                   *, num_graphs):
    n_s, n_t = x_s.shape[0], x_t.shape[0]
    # NOTE: s/t sides are stacked on a leading axis; they must share N (pad if needed).
    mask_s, dinv_s, pool_s = build_graph_operands(edge_index_s, batch_s, n_s, num_graphs)
    mask_t, dinv_t, pool_t = build_graph_operands(edge_index_t, batch_t, n_t, num_graphs)
    x2 = jnp.stack([x_s, x_t], axis=0)
    mask2 = jnp.stack([mask_s, mask_t], axis=0)
    dinv2 = jnp.stack([dinv_s, dinv_t], axis=0)
    pool2 = jnp.stack([pool_s, pool_t], axis=0)
    return gcngat_pallas(x2, mask2, dinv2, pool2, params)


# ----------------------------------------------------------------------------
# Deterministic parameter init (synthetic, matches module shapes)
# ----------------------------------------------------------------------------
def init_params(key):
    ks = jax.random.split(key, 16)

    def w(k, shape, scale=0.1):
        return (scale * jax.random.normal(k, shape)).astype(F32)

    return {
        # GCNConv(1 -> 64)
        "wg": w(ks[0], (1, 64)), "bg": w(ks[1], (1, 64)),
        # GATConv(64 -> 64), heads=1
        "wa": w(ks[2], (64, 64)), "a_src": w(ks[3], (64, 1)),
        "a_dst": w(ks[4], (64, 1)), "ba": w(ks[5], (1, 64)),
        # GraphAggregator(64, 48, 32)
        "w1": w(ks[6], (64, 32)), "b1": w(ks[7], (1, 32)),
        "w2": w(ks[8], (64, 32)), "b2": w(ks[9], (1, 32)),
        "w3": w(ks[10], (32, 48)), "b3": w(ks[11], (1, 48)),
        "w4": w(ks[12], (48, 32)), "b4": w(ks[13], (1, 32)),
        # MLP(64, 32, 2, num_layers=3)
        "wc1": w(ks[14], (64, 32)), "bc1": jnp.zeros((1, 32), F32),
        "wc2": w(ks[15], (32, 32)), "bc2": jnp.zeros((1, 32), F32),
        "wc3": w(jax.random.fold_in(key, 99), (32, 2)), "bc3": jnp.zeros((1, 2), F32),
    }


def ring_graph_edges(num_graphs, nodes_per_graph):
    """Bidirectional ring graph per batch element, offset into one node index space."""
    srcs, dsts = [], []
    for g in range(num_graphs):
        off = g * nodes_per_graph
        for i in range(nodes_per_graph):
            j = (i + 1) % nodes_per_graph
            srcs += [off + i, off + j]
            dsts += [off + j, off + i]
    return jnp.array([srcs, dsts], dtype=jnp.int32)


# ----------------------------------------------------------------------------
if __name__ == "__main__":
    num_graphs = 2
    nodes_per_graph = 16
    n = num_graphs * nodes_per_graph

    key = jax.random.PRNGKey(0)
    k_xs, k_xt, k_p = jax.random.split(key, 3)

    x_s = jax.random.normal(k_xs, (n, 1), dtype=F32)
    x_t = jax.random.normal(k_xt, (n, 1), dtype=F32)
    edge_index_s = ring_graph_edges(num_graphs, nodes_per_graph)
    edge_index_t = ring_graph_edges(num_graphs, nodes_per_graph)
    x_s_batch = jnp.repeat(jnp.arange(num_graphs, dtype=jnp.int32), nodes_per_graph)
    x_t_batch = jnp.repeat(jnp.arange(num_graphs, dtype=jnp.int32), nodes_per_graph)

    params = init_params(k_p)

    out = gcngat_forward(x_s, edge_index_s, x_s_batch,
                         x_t, edge_index_t, x_t_batch,
                         params, num_graphs=num_graphs)
    out = jax.block_until_ready(out)
    assert out.shape == (num_graphs, 2) and out.dtype == F32
    assert bool(jnp.all(jnp.isfinite(out)))
    print("KERNEL_OK")
</pallas_src>

<mosaic_0001>
module attributes {stable_mosaic.version = 11 : i64} {
  func.func @gcngat_kernel(%arg0: i32, %arg1: memref<1x32x1xf32, #tpu.memory_space<vmem>>, %arg2: memref<1x32x32xbf16, #tpu.memory_space<vmem>>, %arg3: memref<1x32x1xf32, #tpu.memory_space<vmem>>, %arg4: memref<1x2x32xf32, #tpu.memory_space<vmem>>, %arg5: memref<1x64xf32, #tpu.memory_space<vmem>>, %arg6: memref<1x64xf32, #tpu.memory_space<vmem>>, %arg7: memref<64x64xf32, #tpu.memory_space<vmem>>, %arg8: memref<1x64xf32, #tpu.memory_space<vmem>>, %arg9: memref<1x64xf32, #tpu.memory_space<vmem>>, %arg10: memref<1x64xf32, #tpu.memory_space<vmem>>, %arg11: memref<64x64xf32, #tpu.memory_space<vmem>>, %arg12: memref<1x64xf32, #tpu.memory_space<vmem>>, %arg13: memref<32x48xf32, #tpu.memory_space<vmem>>, %arg14: memref<1x48xf32, #tpu.memory_space<vmem>>, %arg15: memref<48x32xf32, #tpu.memory_space<vmem>>, %arg16: memref<1x32xf32, #tpu.memory_space<vmem>>, %arg17: memref<64x32xf32, #tpu.memory_space<vmem>>, %arg18: memref<1x32xf32, #tpu.memory_space<vmem>>, %arg19: memref<32x32xf32, #tpu.memory_space<vmem>>, %arg20: memref<1x32xf32, #tpu.memory_space<vmem>>, %arg21: memref<32x2xf32, #tpu.memory_space<vmem>>, %arg22: memref<1x2xf32, #tpu.memory_space<vmem>>, %arg23: memref<2x2xf32, #tpu.memory_space<vmem>>, %arg24: memref<2x2x32xf32, #tpu.memory_space<vmem>>) attributes {dimension_semantics = [#tpu.dimension_semantics<arbitrary>], iteration_bounds = array<i64: 2>, scalar_prefetch = 0 : i64, scratch_operands = 1 : i64, tpu.core_type = #tpu.core_type<tc>, window_params = [{transform_indices = @transform_0, window_bounds = array<i64: 1, 32, 1>}, {transform_indices = @transform_1, window_bounds = array<i64: 1, 32, 32>}, {transform_indices = @transform_2, window_bounds = array<i64: 1, 32, 1>}, {transform_indices = @transform_3, window_bounds = array<i64: 1, 2, 32>}, {pipeline_mode = #tpu.pipeline_mode<synchronous>, transform_indices = @transform_4, window_bounds = array<i64: 1, 64>}, {pipeline_mode = #tpu.pipeline_mode<synchronous>, transform_indices = @transform_5, window_bounds = array<i64: 1, 64>}, {pipeline_mode = #tpu.pipeline_mode<synchronous>, transform_indices = @transform_6, window_bounds = array<i64: 64, 64>}, {pipeline_mode = #tpu.pipeline_mode<synchronous>, transform_indices = @transform_7, window_bounds = array<i64: 1, 64>}, {pipeline_mode = #tpu.pipeline_mode<synchronous>, transform_indices = @transform_8, window_bounds = array<i64: 1, 64>}, {pipeline_mode = #tpu.pipeline_mode<synchronous>, transform_indices = @transform_9, window_bounds = array<i64: 1, 64>}, {pipeline_mode = #tpu.pipeline_mode<synchronous>, transform_indices = @transform_10, window_bounds = array<i64: 64, 64>}, {pipeline_mode = #tpu.pipeline_mode<synchronous>, transform_indices = @transform_11, window_bounds = array<i64: 1, 64>}, {pipeline_mode = #tpu.pipeline_mode<synchronous>, transform_indices = @transform_12, window_bounds = array<i64: 32, 48>}, {pipeline_mode = #tpu.pipeline_mode<synchronous>, transform_indices = @transform_13, window_bounds = array<i64: 1, 48>}, {pipeline_mode = #tpu.pipeline_mode<synchronous>, transform_indices = @transform_14, window_bounds = array<i64: 48, 32>}, {pipeline_mode = #tpu.pipeline_mode<synchronous>, transform_indices = @transform_15, window_bounds = array<i64: 1, 32>}, {pipeline_mode = #tpu.pipeline_mode<synchronous>, transform_indices = @transform_16, window_bounds = array<i64: 64, 32>}, {pipeline_mode = #tpu.pipeline_mode<synchronous>, transform_indices = @transform_17, window_bounds = array<i64: 1, 32>}, {pipeline_mode = #tpu.pipeline_mode<synchronous>, transform_indices = @transform_18, window_bounds = array<i64: 32, 32>}, {pipeline_mode = #tpu.pipeline_mode<synchronous>, transform_indices = @transform_19, window_bounds = array<i64: 1, 32>}, {pipeline_mode = #tpu.pipeline_mode<synchronous>, transform_indices = @transform_20, window_bounds = array<i64: 32, 2>}, {pipeline_mode = #tpu.pipeline_mode<synchronous>, transform_indices = @transform_21, window_bounds = array<i64: 1, 2>}, {pipeline_mode = #tpu.pipeline_mode<synchronous>, transform_indices = @transform_22, window_bounds = array<i64: 2, 2>}]} {
    %c0_i32 = arith.constant 0 : i32
    %0 = arith.cmpi eq, %arg0, %c0_i32 : i32
    %1 = arith.extui %0 : i1 to i32
    %c0_i32_0 = arith.constant 0 : i32
    %2 = arith.cmpi ne, %1, %c0_i32_0 : i32
    scf.if %2 {
      %cst_59 = arith.constant 0.000000e+00 : f32
      %106 = vector.broadcast %cst_59 : f32 to vector<2x2xf32>
      %c0_60 = arith.constant 0 : index
      %c0_61 = arith.constant 0 : index
      %107 = vector.load %arg23[%c0_60, %c0_61] : memref<2x2xf32, #tpu.memory_space<vmem>>, vector<2x2xf32>
      tpu.vector_store %arg23[%c0_60, %c0_61], %106 {strides = array<i32>} : memref<2x2xf32, #tpu.memory_space<vmem>>, vector<2x2xf32>,
    } else {
    }
    %c0 = arith.constant 0 : index
    %c0_1 = arith.constant 0 : index
    %c0_2 = arith.constant 0 : index
    %3 = vector.load %arg2[%c0, %c0_1, %c0_2] : memref<1x32x32xbf16, #tpu.memory_space<vmem>>, vector<1x32x32xbf16>
    %4 = vector.shape_cast %3 : vector<1x32x32xbf16> to vector<32x32xbf16>
    %5 = arith.extf %4 : vector<32x32xbf16> to vector<32x32xf32>
    %c0_3 = arith.constant 0 : index
    %c0_4 = arith.constant 0 : index
    %c0_5 = arith.constant 0 : index
    %6 = vector.load %arg3[%c0_3, %c0_4, %c0_5] : memref<1x32x1xf32, #tpu.memory_space<vmem>>, vector<1x32x1xf32>
    %7 = vector.shape_cast %6 : vector<1x32x1xf32> to vector<32x1xf32>
    %c0_6 = arith.constant 0 : index
    %c0_7 = arith.constant 0 : index
    %c0_8 = arith.constant 0 : index
    %8 = vector.load %arg1[%c0_6, %c0_7, %c0_8] : memref<1x32x1xf32, #tpu.memory_space<vmem>>, vector<1x32x1xf32>
    %9 = vector.shape_cast %8 : vector<1x32x1xf32> to vector<32x1xf32>
    %c0_9 = arith.constant 0 : index
    %c0_10 = arith.constant 0 : index
    %10 = vector.load %arg5[%c0_9, %c0_10] : memref<1x64xf32, #tpu.memory_space<vmem>>, vector<1x64xf32>
    %11 = vector.broadcast %9 : vector<32x1xf32> to vector<32x64xf32>
    %12 = vector.broadcast %10 : vector<1x64xf32> to vector<32x64xf32>
    %13 = arith.mulf %11, %12 : vector<32x64xf32>
    %14 = vector.broadcast %7 : vector<32x1xf32> to vector<32x64xf32>
    %15 = arith.mulf %14, %13 : vector<32x64xf32>
    %cst = arith.constant dense<0.000000e+00> : vector<32x64xf32>
    %16 = tpu.matmul %5, %15, %cst {dimension_numbers = #tpu.dot_dimension_numbers<[1], [0], [0], [1], [0, 0, 1, 1], [], []>} : vector<32x32xf32>, vector<32x64xf32>, vector<32x64xf32> -> vector<32x64xf32>
    %17 = vector.broadcast %7 : vector<32x1xf32> to vector<32x64xf32>
    %18 = arith.mulf %17, %16 : vector<32x64xf32>
    %c0_11 = arith.constant 0 : index
    %c0_12 = arith.constant 0 : index
    %19 = vector.load %arg6[%c0_11, %c0_12] : memref<1x64xf32, #tpu.memory_space<vmem>>, vector<1x64xf32>
    %20 = vector.broadcast %19 : vector<1x64xf32> to vector<32x64xf32>
    %21 = arith.addf %18, %20 : vector<32x64xf32>
    %c0_13 = arith.constant 0 : index
    %c0_14 = arith.constant 0 : index
    %22 = vector.load %arg7[%c0_13, %c0_14] : memref<64x64xf32, #tpu.memory_space<vmem>>, vector<64x64xf32>
    %cst_15 = arith.constant dense<0.000000e+00> : vector<32x64xf32>
    %23 = tpu.matmul %21, %22, %cst_15 {dimension_numbers = #tpu.dot_dimension_numbers<[1], [0], [0], [1], [0, 0, 1, 1], [], []>} : vector<32x64xf32>, vector<64x64xf32>, vector<32x64xf32> -> vector<32x64xf32>
    %c0_16 = arith.constant 0 : index
    %c0_17 = arith.constant 0 : index
    %24 = vector.load %arg9[%c0_16, %c0_17] : memref<1x64xf32, #tpu.memory_space<vmem>>, vector<1x64xf32>
    %25 = vector.broadcast %24 : vector<1x64xf32> to vector<32x64xf32>
    %26 = arith.mulf %23, %25 : vector<32x64xf32>
    %cst_18 = arith.constant dense<0.000000e+00> : vector<32xf32>
    %27 = vector.multi_reduction <add>, %26, %cst_18 [1] : vector<32x64xf32> to vector<32xf32>
    %28 = vector.shape_cast %27 : vector<32xf32> to vector<32x1xf32>
    %c0_19 = arith.constant 0 : index
    %c0_20 = arith.constant 0 : index
    %29 = vector.load %arg8[%c0_19, %c0_20] : memref<1x64xf32, #tpu.memory_space<vmem>>, vector<1x64xf32>
    %cst_21 = arith.constant dense<0.000000e+00> : vector<1x32xf32>
    %30 = tpu.matmul %29, %23, %cst_21 {dimension_numbers = #tpu.dot_dimension_numbers<[1], [1], [0], [0], [0, 0, 1, 0], [], []>} : vector<1x64xf32>, vector<32x64xf32>, vector<1x32xf32> -> vector<1x32xf32>
    %31 = vector.broadcast %28 : vector<32x1xf32> to vector<32x32xf32>
    %32 = vector.broadcast %30 : vector<1x32xf32> to vector<32x32xf32>
    %33 = arith.addf %31, %32 : vector<32x32xf32>
    %cst_22 = arith.constant 0.000000e+00 : f32
    %34 = vector.broadcast %cst_22 : f32 to vector<32x32xf32>
    %35 = arith.cmpf oge, %33, %34 : vector<32x32xf32>
    %cst_23 = arith.constant 2.000000e-01 : f32
    %36 = vector.broadcast %cst_23 : f32 to vector<32x32xf32>
    %37 = arith.mulf %36, %33 : vector<32x32xf32>
    %38 = arith.select %35, %33, %37 : vector<32x32xi1>, vector<32x32xf32>
    %cst_24 = arith.constant 0.000000e+00 : f32
    %39 = vector.broadcast %cst_24 : f32 to vector<32x32xf32>
    %40 = arith.cmpf ogt, %5, %39 : vector<32x32xf32>
    %cst_25 = arith.constant -1.000000e+30 : f32
    %41 = vector.broadcast %cst_25 : f32 to vector<32x32xf32>
    %42 = arith.select %40, %38, %41 : vector<32x32xi1>, vector<32x32xf32>
    %cst_26 = arith.constant dense<0xFF800000> : vector<32xf32>
    %43 = vector.multi_reduction <maximumf>, %42, %cst_26 [1] : vector<32x32xf32> to vector<32xf32>
    %44 = vector.shape_cast %43 : vector<32xf32> to vector<32x1xf32>
    %45 = vector.broadcast %44 : vector<32x1xf32> to vector<32x32xf32>
    %46 = arith.subf %42, %45 : vector<32x32xf32>
    %47 = math.exp %46 : vector<32x32xf32>
    %48 = arith.mulf %47, %5 : vector<32x32xf32>
    %cst_27 = arith.constant dense<0.000000e+00> : vector<32xf32>
    %49 = vector.multi_reduction <add>, %48, %cst_27 [1] : vector<32x32xf32> to vector<32xf32>
    %50 = vector.shape_cast %49 : vector<32xf32> to vector<32x1xf32>
    %51 = tpu.reciprocal %50 {approx = true} : vector<32x1xf32> -> vector<32x1xf32>
    %52 = vector.broadcast %51 : vector<32x1xf32> to vector<32x32xf32>
    %53 = arith.mulf %48, %52 : vector<32x32xf32>
    %cst_28 = arith.constant dense<0.000000e+00> : vector<32x64xf32>
    %54 = tpu.matmul %53, %23, %cst_28 {dimension_numbers = #tpu.dot_dimension_numbers<[1], [0], [0], [1], [0, 0, 1, 1], [], []>} : vector<32x32xf32>, vector<32x64xf32>, vector<32x64xf32> -> vector<32x64xf32>
    %c0_29 = arith.constant 0 : index
    %c0_30 = arith.constant 0 : index
    %55 = vector.load %arg10[%c0_29, %c0_30] : memref<1x64xf32, #tpu.memory_space<vmem>>, vector<1x64xf32>
    %56 = vector.broadcast %55 : vector<1x64xf32> to vector<32x64xf32>
    %57 = arith.addf %54, %56 : vector<32x64xf32>
    %c0_31 = arith.constant 0 : index
    %c0_32 = arith.constant 0 : index
    %58 = vector.load %arg11[%c0_31, %c0_32] : memref<64x64xf32, #tpu.memory_space<vmem>>, vector<64x64xf32>
    %cst_33 = arith.constant dense<0.000000e+00> : vector<32x64xf32>
    %59 = tpu.matmul %57, %58, %cst_33 {dimension_numbers = #tpu.dot_dimension_numbers<[1], [0], [0], [1], [0, 0, 1, 1], [], []>} : vector<32x64xf32>, vector<64x64xf32>, vector<32x64xf32> -> vector<32x64xf32>
    %c0_34 = arith.constant 0 : index
    %c0_35 = arith.constant 0 : index
    %60 = vector.load %arg12[%c0_34, %c0_35] : memref<1x64xf32, #tpu.memory_space<vmem>>, vector<1x64xf32>
    %61 = vector.broadcast %60 : vector<1x64xf32> to vector<32x64xf32>
    %62 = arith.addf %59, %61 : vector<32x64xf32>
    %63 = vector.extract_strided_slice %62 {offsets = [0, 0], sizes = [32, 32], strides = [1, 1]} : vector<32x64xf32> to vector<32x32xf32>
    %cst_36 = arith.constant 0.000000e+00 : f32
    %64 = vector.broadcast %cst_36 : f32 to vector<32x32xf32>
    %65 = arith.cmpf oge, %63, %64 : vector<32x32xf32>
    %cst_37 = arith.constant 0.00999999977 : f32
    %66 = vector.broadcast %cst_37 : f32 to vector<32x32xf32>
    %67 = arith.mulf %66, %63 : vector<32x32xf32>
    %68 = arith.select %65, %63, %67 : vector<32x32xi1>, vector<32x32xf32>
    %69 = vector.extract_strided_slice %62 {offsets = [0, 32], sizes = [32, 32], strides = [1, 1]} : vector<32x64xf32> to vector<32x32xf32>
    %cst_38 = arith.constant dense<0xFF800000> : vector<32xf32>
    %70 = vector.multi_reduction <maximumf>, %69, %cst_38 [1] : vector<32x32xf32> to vector<32xf32>
    %71 = vector.shape_cast %70 : vector<32xf32> to vector<32x1xf32>
    %72 = vector.broadcast %71 : vector<32x1xf32> to vector<32x32xf32>
    %73 = arith.subf %69, %72 : vector<32x32xf32>
    %74 = math.exp %73 : vector<32x32xf32>
    %cst_39 = arith.constant dense<0.000000e+00> : vector<32xf32>
    %75 = vector.multi_reduction <add>, %74, %cst_39 [1] : vector<32x32xf32> to vector<32xf32>
    %76 = vector.shape_cast %75 : vector<32xf32> to vector<32x1xf32>
    %77 = tpu.reciprocal %76 {approx = true} : vector<32x1xf32> -> vector<32x1xf32>
    %78 = vector.broadcast %77 : vector<32x1xf32> to vector<32x32xf32>
    %79 = arith.mulf %74, %78 : vector<32x32xf32>
    %80 = arith.mulf %68, %79 : vector<32x32xf32>
    %c0_40 = arith.constant 0 : index
    %c0_41 = arith.constant 0 : index
    %81 = vector.load %arg13[%c0_40, %c0_41] : memref<32x48xf32, #tpu.memory_space<vmem>>, vector<32x48xf32>
    %cst_42 = arith.constant dense<0.000000e+00> : vector<32x48xf32>
    %82 = tpu.matmul %80, %81, %cst_42 {dimension_numbers = #tpu.dot_dimension_numbers<[1], [0], [0], [1], [0, 0, 1, 1], [], []>} : vector<32x32xf32>, vector<32x48xf32>, vector<32x48xf32> -> vector<32x48xf32>
    %c0_43 = arith.constant 0 : index
    %c0_44 = arith.constant 0 : index
    %83 = vector.load %arg14[%c0_43, %c0_44] : memref<1x48xf32, #tpu.memory_space<vmem>>, vector<1x48xf32>
    %84 = vector.broadcast %83 : vector<1x48xf32> to vector<32x48xf32>
    %85 = arith.addf %82, %84 : vector<32x48xf32>
    %cst_45 = arith.constant 0.000000e+00 : f32
    %86 = vector.broadcast %cst_45 : f32 to vector<32x48xf32>
    %87 = arith.cmpf oge, %85, %86 : vector<32x48xf32>
    %cst_46 = arith.constant 0.00999999977 : f32
    %88 = vector.broadcast %cst_46 : f32 to vector<32x48xf32>
    %89 = arith.mulf %88, %85 : vector<32x48xf32>
    %90 = arith.select %87, %85, %89 : vector<32x48xi1>, vector<32x48xf32>
    %c0_47 = arith.constant 0 : index
    %c0_48 = arith.constant 0 : index
    %91 = vector.load %arg15[%c0_47, %c0_48] : memref<48x32xf32, #tpu.memory_space<vmem>>, vector<48x32xf32>
    %cst_49 = arith.constant dense<0.000000e+00> : vector<32x32xf32>
    %92 = tpu.matmul %90, %91, %cst_49 {dimension_numbers = #tpu.dot_dimension_numbers<[1], [0], [0], [1], [0, 0, 1, 1], [], []>} : vector<32x48xf32>, vector<48x32xf32>, vector<32x32xf32> -> vector<32x32xf32>
    %c0_50 = arith.constant 0 : index
    %c0_51 = arith.constant 0 : index
    %93 = vector.load %arg16[%c0_50, %c0_51] : memref<1x32xf32, #tpu.memory_space<vmem>>, vector<1x32xf32>
    %94 = vector.broadcast %93 : vector<1x32xf32> to vector<32x32xf32>
    %95 = arith.addf %92, %94 : vector<32x32xf32>
    %c0_52 = arith.constant 0 : index
    %c0_53 = arith.constant 0 : index
    %c0_54 = arith.constant 0 : index
    %96 = vector.load %arg4[%c0_52, %c0_53, %c0_54] : memref<1x2x32xf32, #tpu.memory_space<vmem>>, vector<1x2x32xf32>
    %97 = vector.shape_cast %96 : vector<1x2x32xf32> to vector<2x32xf32>
    %cst_55 = arith.constant dense<0.000000e+00> : vector<2x32xf32>
    %98 = tpu.matmul %97, %95, %cst_55 {dimension_numbers = #tpu.dot_dimension_numbers<[1], [0], [0], [1], [0, 0, 1, 1], [], []>} : vector<2x32xf32>, vector<32x32xf32>, vector<2x32xf32> -> vector<2x32xf32>
    %99 = arith.index_cast %arg0 : i32 to index
    %c0_56 = arith.constant 0 : index
    %c0_57 = arith.constant 0 : index
    %100 = vector.load %arg24[%99, %c0_56, %c0_57] : memref<2x2x32xf32, #tpu.memory_space<vmem>>, vector<1x2x32xf32>
    %101 = vector.shape_cast %100 : vector<1x2x32xf32> to vector<2x32xf32>
    %102 = vector.shape_cast %98 : vector<2x32xf32> to vector<1x2x32xf32>
    tpu.vector_store %arg24[%99, %c0_56, %c0_57], %102 {strides = array<i32>} : memref<2x2x32xf32, #tpu.memory_space<vmem>>, vector<1x2x32xf32>,
    %c1_i32 = arith.constant 1 : i32
    %103 = arith.cmpi eq, %arg0, %c1_i32 : i32
    %104 = arith.extui %103 : i1 to i32
    %c0_i32_58 = arith.constant 0 : i32
    %105 = arith.cmpi ne, %104, %c0_i32_58 : i32
    scf.if %105 {
      %c0_59 = arith.constant 0 : index
      %c0_60 = arith.constant 0 : index
      %c0_61 = arith.constant 0 : index
      %106 = vector.load %arg24[%c0_59, %c0_60, %c0_61] : memref<2x2x32xf32, #tpu.memory_space<vmem>>, vector<1x2x32xf32>
      %107 = vector.shape_cast %106 : vector<1x2x32xf32> to vector<2x32xf32>
      %c1 = arith.constant 1 : index
      %c0_62 = arith.constant 0 : index
      %c0_63 = arith.constant 0 : index
      %108 = vector.load %arg24[%c1, %c0_62, %c0_63] : memref<2x2x32xf32, #tpu.memory_space<vmem>>, vector<1x2x32xf32>
      %109 = vector.shape_cast %108 : vector<1x2x32xf32> to vector<2x32xf32>
      %110 = tpu.concatenate %107, %109 in 1 : vector<2x32xf32>, vector<2x32xf32> -> vector<2x64xf32>
      %c0_64 = arith.constant 0 : index
      %c0_65 = arith.constant 0 : index
      %111 = vector.load %arg17[%c0_64, %c0_65] : memref<64x32xf32, #tpu.memory_space<vmem>>, vector<64x32xf32>
      %cst_66 = arith.constant dense<0.000000e+00> : vector<2x32xf32>
      %112 = tpu.matmul %110, %111, %cst_66 {dimension_numbers = #tpu.dot_dimension_numbers<[1], [0], [0], [1], [0, 0, 1, 1], [], []>} : vector<2x64xf32>, vector<64x32xf32>, vector<2x32xf32> -> vector<2x32xf32>
      %c0_67 = arith.constant 0 : index
      %c0_68 = arith.constant 0 : index
      %113 = vector.load %arg18[%c0_67, %c0_68] : memref<1x32xf32, #tpu.memory_space<vmem>>, vector<1x32xf32>
      %114 = vector.broadcast %113 : vector<1x32xf32> to vector<2x32xf32>
      %115 = arith.addf %112, %114 : vector<2x32xf32>
      %cst_69 = arith.constant 0.000000e+00 : f32
      %116 = vector.broadcast %cst_69 : f32 to vector<2x32xf32>
      %117 = arith.maximumf %115, %116 : vector<2x32xf32>
      %c0_70 = arith.constant 0 : index
      %c0_71 = arith.constant 0 : index
      %118 = vector.load %arg19[%c0_70, %c0_71] : memref<32x32xf32, #tpu.memory_space<vmem>>, vector<32x32xf32>
      %cst_72 = arith.constant dense<0.000000e+00> : vector<2x32xf32>
      %119 = tpu.matmul %117, %118, %cst_72 {dimension_numbers = #tpu.dot_dimension_numbers<[1], [0], [0], [1], [0, 0, 1, 1], [], []>} : vector<2x32xf32>, vector<32x32xf32>, vector<2x32xf32> -> vector<2x32xf32>
      %c0_73 = arith.constant 0 : index
      %c0_74 = arith.constant 0 : index
      %120 = vector.load %arg20[%c0_73, %c0_74] : memref<1x32xf32, #tpu.memory_space<vmem>>, vector<1x32xf32>
      %121 = vector.broadcast %120 : vector<1x32xf32> to vector<2x32xf32>
      %122 = arith.addf %119, %121 : vector<2x32xf32>
      %cst_75 = arith.constant 0.000000e+00 : f32
      %123 = vector.broadcast %cst_75 : f32 to vector<2x32xf32>
      %124 = arith.maximumf %122, %123 : vector<2x32xf32>
      %c0_76 = arith.constant 0 : index
      %c0_77 = arith.constant 0 : index
      %125 = vector.load %arg21[%c0_76, %c0_77] : memref<32x2xf32, #tpu.memory_space<vmem>>, vector<32x2xf32>
      %cst_78 = arith.constant dense<0.000000e+00> : vector<2x2xf32>
      %126 = tpu.matmul %124, %125, %cst_78 {dimension_numbers = #tpu.dot_dimension_numbers<[1], [0], [0], [1], [0, 0, 1, 1], [], []>} : vector<2x32xf32>, vector<32x2xf32>, vector<2x2xf32> -> vector<2x2xf32>
      %c0_79 = arith.constant 0 : index
      %c0_80 = arith.constant 0 : index
      %127 = vector.load %arg22[%c0_79, %c0_80] : memref<1x2xf32, #tpu.memory_space<vmem>>, vector<1x2xf32>
      %128 = vector.broadcast %127 : vector<1x2xf32> to vector<2x2xf32>
      %129 = arith.addf %126, %128 : vector<2x2xf32>
      %c0_81 = arith.constant 0 : index
      %c0_82 = arith.constant 0 : index
      %130 = vector.load %arg23[%c0_81, %c0_82] : memref<2x2xf32, #tpu.memory_space<vmem>>, vector<2x2xf32>
      tpu.vector_store %arg23[%c0_81, %c0_82], %129 {strides = array<i32>} : memref<2x2xf32, #tpu.memory_space<vmem>>, vector<2x2xf32>,
    } else {
    }
    return
  }
  func.func @transform_0(%arg0: i32) -> (i32, i32, i32) {
    %c0_i32 = arith.constant 0 : i32
    %c0_i32_0 = arith.constant 0 : i32
    %c0_i32_1 = arith.constant 0 : i32
    return %arg0, %c0_i32, %c0_i32_0 : i32, i32, i32
  }
  func.func @transform_1(%arg0: i32) -> (i32, i32, i32) {
    %c0_i32 = arith.constant 0 : i32
    %c0_i32_0 = arith.constant 0 : i32
    %c0_i32_1 = arith.constant 0 : i32
    return %arg0, %c0_i32, %c0_i32_0 : i32, i32, i32
  }
  func.func @transform_2(%arg0: i32) -> (i32, i32, i32) {
    %c0_i32 = arith.constant 0 : i32
    %c0_i32_0 = arith.constant 0 : i32
    %c0_i32_1 = arith.constant 0 : i32
    return %arg0, %c0_i32, %c0_i32_0 : i32, i32, i32
  }
  func.func @transform_3(%arg0: i32) -> (i32, i32, i32) {
    %c0_i32 = arith.constant 0 : i32
    %c0_i32_0 = arith.constant 0 : i32
    %c0_i32_1 = arith.constant 0 : i32
    return %arg0, %c0_i32, %c0_i32_0 : i32, i32, i32
  }
  func.func @transform_4(%arg0: i32) -> (i32, i32) {
    %c0_i32 = arith.constant 0 : i32
    %c0_i32_0 = arith.constant 0 : i32
    %c0_i32_1 = arith.constant 0 : i32
    return %c0_i32, %c0_i32_0 : i32, i32
  }
  func.func @transform_5(%arg0: i32) -> (i32, i32) {
    %c0_i32 = arith.constant 0 : i32
    %c0_i32_0 = arith.constant 0 : i32
    %c0_i32_1 = arith.constant 0 : i32
    return %c0_i32, %c0_i32_0 : i32, i32
  }
  func.func @transform_6(%arg0: i32) -> (i32, i32) {
    %c0_i32 = arith.constant 0 : i32
    %c0_i32_0 = arith.constant 0 : i32
    %c0_i32_1 = arith.constant 0 : i32
    return %c0_i32, %c0_i32_0 : i32, i32
  }
  func.func @transform_7(%arg0: i32) -> (i32, i32) {
    %c0_i32 = arith.constant 0 : i32
    %c0_i32_0 = arith.constant 0 : i32
    %c0_i32_1 = arith.constant 0 : i32
    return %c0_i32, %c0_i32_0 : i32, i32
  }
  func.func @transform_8(%arg0: i32) -> (i32, i32) {
    %c0_i32 = arith.constant 0 : i32
    %c0_i32_0 = arith.constant 0 : i32
    %c0_i32_1 = arith.constant 0 : i32
    return %c0_i32, %c0_i32_0 : i32, i32
  }
  func.func @transform_9(%arg0: i32) -> (i32, i32) {
    %c0_i32 = arith.constant 0 : i32
    %c0_i32_0 = arith.constant 0 : i32
    %c0_i32_1 = arith.constant 0 : i32
    return %c0_i32, %c0_i32_0 : i32, i32
  }
  func.func @transform_10(%arg0: i32) -> (i32, i32) {
    %c0_i32 = arith.constant 0 : i32
    %c0_i32_0 = arith.constant 0 : i32
    %c0_i32_1 = arith.constant 0 : i32
    return %c0_i32, %c0_i32_0 : i32, i32
  }
  func.func @transform_11(%arg0: i32) -> (i32, i32) {
    %c0_i32 = arith.constant 0 : i32
    %c0_i32_0 = arith.constant 0 : i32
    %c0_i32_1 = arith.constant 0 : i32
    return %c0_i32, %c0_i32_0 : i32, i32
  }
  func.func @transform_12(%arg0: i32) -> (i32, i32) {
    %c0_i32 = arith.constant 0 : i32
    %c0_i32_0 = arith.constant 0 : i32
    %c0_i32_1 = arith.constant 0 : i32
    return %c0_i32, %c0_i32_0 : i32, i32
  }
  func.func @transform_13(%arg0: i32) -> (i32, i32) {
    %c0_i32 = arith.constant 0 : i32
    %c0_i32_0 = arith.constant 0 : i32
    %c0_i32_1 = arith.constant 0 : i32
    return %c0_i32, %c0_i32_0 : i32, i32
  }
  func.func @transform_14(%arg0: i32) -> (i32, i32) {
    %c0_i32 = arith.constant 0 : i32
    %c0_i32_0 = arith.constant 0 : i32
    %c0_i32_1 = arith.constant 0 : i32
    return %c0_i32, %c0_i32_0 : i32, i32
  }
  func.func @transform_15(%arg0: i32) -> (i32, i32) {
    %c0_i32 = arith.constant 0 : i32
    %c0_i32_0 = arith.constant 0 : i32
    %c0_i32_1 = arith.constant 0 : i32
    return %c0_i32, %c0_i32_0 : i32, i32
  }
  func.func @transform_16(%arg0: i32) -> (i32, i32) {
    %c0_i32 = arith.constant 0 : i32
    %c0_i32_0 = arith.constant 0 : i32
    %c0_i32_1 = arith.constant 0 : i32
    return %c0_i32, %c0_i32_0 : i32, i32
  }
  func.func @transform_17(%arg0: i32) -> (i32, i32) {
    %c0_i32 = arith.constant 0 : i32
    %c0_i32_0 = arith.constant 0 : i32
    %c0_i32_1 = arith.constant 0 : i32
    return %c0_i32, %c0_i32_0 : i32, i32
  }
  func.func @transform_18(%arg0: i32) -> (i32, i32) {
    %c0_i32 = arith.constant 0 : i32
    %c0_i32_0 = arith.constant 0 : i32
    %c0_i32_1 = arith.constant 0 : i32
    return %c0_i32, %c0_i32_0 : i32, i32
  }
  func.func @transform_19(%arg0: i32) -> (i32, i32) {
    %c0_i32 = arith.constant 0 : i32
    %c0_i32_0 = arith.constant 0 : i32
    %c0_i32_1 = arith.constant 0 : i32
    return %c0_i32, %c0_i32_0 : i32, i32
  }
  func.func @transform_20(%arg0: i32) -> (i32, i32) {
    %c0_i32 = arith.constant 0 : i32
    %c0_i32_0 = arith.constant 0 : i32
    %c0_i32_1 = arith.constant 0 : i32
    return %c0_i32, %c0_i32_0 : i32, i32
  }
  func.func @transform_21(%arg0: i32) -> (i32, i32) {
    %c0_i32 = arith.constant 0 : i32
    %c0_i32_0 = arith.constant 0 : i32
    %c0_i32_1 = arith.constant 0 : i32
    return %c0_i32, %c0_i32_0 : i32, i32
  }
  func.func @transform_22(%arg0: i32) -> (i32, i32) {
    %c0_i32 = arith.constant 0 : i32
    %c0_i32_0 = arith.constant 0 : i32
    %c0_i32_1 = arith.constant 0 : i32
    return %c0_i32, %c0_i32_0 : i32, i32
  }
}

</mosaic_0001>

<llo_original>
// kernel: gcngat_forward.1
$region0: #{gcngat_forward.1}
  #allocation0 [shape = 'u32[]', space=smem, size = 0x4, offset = 0x4, fixed_abs, tag = 'smem constant byte address 0x4 - core index']
  #allocation1 [shape = 'u32[72,128]{1,0:T(1,128)}', space=vmem, size = 0x9000, scoped, tag = 'internal scratch']
  #allocation2 [shape = 'f32[2,2,32]{2,1,0:T(2,128)}', space=vmem, size = 0x800, scoped, tag = 'scratch operand']
  %s0 = inlined_call_operand.vmem [shape: f32[2,32,1], index: 0, kind: input, shape index: {}]
  %s1 = inlined_call_operand.vmem [shape: bf16[2,32,32], index: 1, kind: input, shape index: {}]
  %s2 = inlined_call_operand.vmem [shape: f32[2,32,1], index: 2, kind: input, shape index: {}]
  %s3 = inlined_call_operand.vmem [shape: f32[2,2,32], index: 3, kind: input, shape index: {}]
  %s4 = inlined_call_operand.vmem [shape: f32[1,64], index: 4, kind: input, shape index: {}]
  %s5 = inlined_call_operand.vmem [shape: f32[1,64], index: 5, kind: input, shape index: {}]
  %s6 = inlined_call_operand.vmem [shape: f32[64,64], index: 6, kind: input, shape index: {}]
  %s7 = inlined_call_operand.vmem [shape: f32[1,64], index: 7, kind: input, shape index: {}]
  %s8 = inlined_call_operand.vmem [shape: f32[1,64], index: 8, kind: input, shape index: {}]
  %s9 = inlined_call_operand.vmem [shape: f32[1,64], index: 9, kind: input, shape index: {}]
  %s10 = inlined_call_operand.vmem [shape: f32[64,64], index: 10, kind: input, shape index: {}]
  %s11 = inlined_call_operand.vmem [shape: f32[1,64], index: 11, kind: input, shape index: {}]
  %s12 = inlined_call_operand.vmem [shape: f32[32,48], index: 12, kind: input, shape index: {}]
  %s13 = inlined_call_operand.vmem [shape: f32[1,48], index: 13, kind: input, shape index: {}]
  %s14 = inlined_call_operand.vmem [shape: f32[48,32], index: 14, kind: input, shape index: {}]
  %s15 = inlined_call_operand.vmem [shape: f32[1,32], index: 15, kind: input, shape index: {}]
  %s16 = inlined_call_operand.vmem [shape: f32[64,32], index: 16, kind: input, shape index: {}]
  %s17 = inlined_call_operand.vmem [shape: f32[1,32], index: 17, kind: input, shape index: {}]
  %s18 = inlined_call_operand.vmem [shape: f32[32,32], index: 18, kind: input, shape index: {}]
  %s19 = inlined_call_operand.vmem [shape: f32[1,32], index: 19, kind: input, shape index: {}]
  %s20 = inlined_call_operand.vmem [shape: f32[32,2], index: 20, kind: input, shape index: {}]
  %s21 = inlined_call_operand.vmem [shape: f32[1,2], index: 21, kind: input, shape index: {}]
  %s22 = inlined_call_operand.hbm [shape: f32[2,2], index: 22, kind: output, shape index: {}]
  %s23 = sld [smem:[#allocation0]]
  $region129: #{gcngat_forward.1} parent=0
    _
  %s25 = ssub.s32 1, %s23
  %s26 = scalar_select 0, %s25, %s23
  $region1: #{gcngat_forward.1} parent=0
    #allocation3 [shape = 'u8[1024]{0}', space=vmem, size = 0x400, scoped, tag = 'output window, operand 0, single buffered']
    #allocation4 [shape = 's32[2]{0}', space=sflag, size = 0x8, scoped, tag = 'scoped memory for gcngat_forward.1']
    %27 = vsyncpa [#allocation4], 0
    loop: start=0, step=1, limit=4
    $region2: #{gcngat_forward.1} parent=1 // loop_pre_header
      _
    $region3: #{gcngat_forward.1} parent=1 // loop_header
      %s29 = sphi 0, %s33
      %p30 = scmp.ge.s32.totalorder %s29, 4
      %s39 = sphi 0, %s41
      %s42 = sphi 0, %s39
      %s43 = sphi 0, %s42
      %s59 = sphi 0, %s43
      %s65 = sphi 0, %s67
      %s68 = sphi 0, %s65
      %s69 = sphi 0, %s68
      %s85 = sphi 0, %s69
      %s91 = sphi 0, %s93
      %s94 = sphi 0, %s91
      %s95 = sphi 0, %s94
      %s111 = sphi 0, %s95
      %s117 = sphi 0, %s119
      %s120 = sphi 0, %s117
      %s121 = sphi 0, %s120
      %s137 = sphi 0, %s121
      %s141 = sphi 0, %s141
      %s143 = sphi 0, %s141
      %s144 = sphi 0, %s143
      %s158 = sphi 0, %s144
      %s162 = sphi 0, %s162
      %s164 = sphi 0, %s162
      %s165 = sphi 0, %s164
      %s179 = sphi 0, %s165
      %s183 = sphi 0, %s183
      %s185 = sphi 0, %s183
      %s186 = sphi 0, %s185
      %s200 = sphi 0, %s186
      %s204 = sphi 0, %s204
      %s206 = sphi 0, %s204
      %s207 = sphi 0, %s206
      %s221 = sphi 0, %s207
      %s225 = sphi 0, %s225
      %s227 = sphi 0, %s225
      %s228 = sphi 0, %s227
      %s242 = sphi 0, %s228
      %s246 = sphi 0, %s246
      %s248 = sphi 0, %s246
      %s249 = sphi 0, %s248
      %s263 = sphi 0, %s249
      %s267 = sphi 0, %s267
      %s269 = sphi 0, %s267
      %s270 = sphi 0, %s269
      %s284 = sphi 0, %s270
      %s288 = sphi 0, %s288
      %s290 = sphi 0, %s288
      %s291 = sphi 0, %s290
      %s305 = sphi 0, %s291
      %s309 = sphi 0, %s309
      %s311 = sphi 0, %s309
      %s312 = sphi 0, %s311
      %s326 = sphi 0, %s312
      %s330 = sphi 0, %s330
      %s332 = sphi 0, %s330
      %s333 = sphi 0, %s332
      %s347 = sphi 0, %s333
      %s351 = sphi 0, %s351
      %s353 = sphi 0, %s351
      %s354 = sphi 0, %s353
      %s368 = sphi 0, %s354
      %s372 = sphi 0, %s372
      %s374 = sphi 0, %s372
      %s375 = sphi 0, %s374
      %s389 = sphi 0, %s375
      %s393 = sphi 0, %s393
      %s395 = sphi 0, %s393
      %s396 = sphi 0, %s395
      %s410 = sphi 0, %s396
      %s414 = sphi 0, %s414
      %s416 = sphi 0, %s414
      %s417 = sphi 0, %s416
      %s431 = sphi 0, %s417
      %s435 = sphi 0, %s435
      %s437 = sphi 0, %s435
      %s438 = sphi 0, %s437
      %s452 = sphi 0, %s438
      %s456 = sphi 0, %s456
      %s458 = sphi 0, %s456
      %s459 = sphi 0, %s458
      %s473 = sphi 0, %s459
      %s477 = sphi 0, %s477
      %s479 = sphi 0, %s477
      %s480 = sphi 0, %s479
      %s494 = sphi 0, %s480
      %s498 = sphi 0, %s498
      %s500 = sphi 0, %s498
      %s501 = sphi 0, %s500
      %s515 = sphi 0, %s501
      %s519 = sphi 0, %s519
      %s521 = sphi 0, %s519
      %s522 = sphi 0, %s521
      %s536 = sphi 0, %s522
    $region4: #{gcngat_forward.1} parent=1 // loop_header_branch
      %32 = sbr.rel (%p30) target = $region8
    $region5: #{gcngat_forward.1} parent=1 // loop_body
      %s34 = ssub.s32 %s29, 1
      %s35 = ssub.s32 %s29, 2
      %s36 = sadd.s32 %s29, 1
      %s37 = ssub.s32 %s29, %s36
      %p38 = scmp.eq.s32.totalorder %s37, 0
      %s40 = sadd.s32 %s39, 1
      %s41 = scalar_select %p38, %s39, %s40
      %p44 = pneg %p38
      %p45 = scmp.eq.s32.totalorder %s29, 1
      %p46 = por %p44, %p45
      %p47 = scmp.ne.s32.totalorder %s39, %s42
      %p48 = scmp.eq.s32.totalorder %s29, 0
      %p49 = por %p47, %p48
      %p50 = scmp.ne.s32.totalorder %s39, %s42
      %p51 = scmp.eq.s32.totalorder %s34, 1
      %p52 = por %p50, %p51
      %p53 = scmp.ne.s32.totalorder %s42, %s43
      %p54 = scmp.eq.s32.totalorder %s34, 0
      %p55 = por %p53, %p54
      %p56 = scmp.ne.s32.totalorder %s42, %s43
      %p57 = scmp.eq.s32.totalorder %s35, 1
      %p58 = por %p56, %p57
      %p60 = scmp.ne.s32.totalorder %s43, %s59
      %p61 = scmp.eq.s32.totalorder %s35, 0
      %p62 = por %p60, %p61
      %s63 = ssub.s32 %s29, %s36
      %p64 = scmp.eq.s32.totalorder %s63, 0
      %s66 = sadd.s32 %s65, 1
      %s67 = scalar_select %p64, %s65, %s66
      %p70 = pneg %p64
      %p71 = scmp.eq.s32.totalorder %s29, 1
      %p72 = por %p70, %p71
      %p73 = scmp.ne.s32.totalorder %s65, %s68
      %p74 = scmp.eq.s32.totalorder %s29, 0
      %p75 = por %p73, %p74
      %p76 = scmp.ne.s32.totalorder %s65, %s68
      %p77 = scmp.eq.s32.totalorder %s34, 1
      %p78 = por %p76, %p77
      %p79 = scmp.ne.s32.totalorder %s68, %s69
      %p80 = scmp.eq.s32.totalorder %s34, 0
      %p81 = por %p79, %p80
      %p82 = scmp.ne.s32.totalorder %s68, %s69
      %p83 = scmp.eq.s32.totalorder %s35, 1
      %p84 = por %p82, %p83
      %p86 = scmp.ne.s32.totalorder %s69, %s85
      %p87 = scmp.eq.s32.totalorder %s35, 0
      %p88 = por %p86, %p87
      %s89 = ssub.s32 %s29, %s36
      %p90 = scmp.eq.s32.totalorder %s89, 0
      %s92 = sadd.s32 %s91, 1
      %s93 = scalar_select %p90, %s91, %s92
      %p96 = pneg %p90
      %p97 = scmp.eq.s32.totalorder %s29, 1
      %p98 = por %p96, %p97
      %p99 = scmp.ne.s32.totalorder %s91, %s94
      %p100 = scmp.eq.s32.totalorder %s29, 0
      %p101 = por %p99, %p100
      %p102 = scmp.ne.s32.totalorder %s91, %s94
      %p103 = scmp.eq.s32.totalorder %s34, 1
      %p104 = por %p102, %p103
      %p105 = scmp.ne.s32.totalorder %s94, %s95
      %p106 = scmp.eq.s32.totalorder %s34, 0
      %p107 = por %p105, %p106
      %p108 = scmp.ne.s32.totalorder %s94, %s95
      %p109 = scmp.eq.s32.totalorder %s35, 1
      %p110 = por %p108, %p109
      %p112 = scmp.ne.s32.totalorder %s95, %s111
      %p113 = scmp.eq.s32.totalorder %s35, 0
      %p114 = por %p112, %p113
      %s115 = ssub.s32 %s29, %s36
      %p116 = scmp.eq.s32.totalorder %s115, 0
      %s118 = sadd.s32 %s117, 1
      %s119 = scalar_select %p116, %s117, %s118
      %p122 = pneg %p116
      %p123 = scmp.eq.s32.totalorder %s29, 1
      %p124 = por %p122, %p123
      %p125 = scmp.ne.s32.totalorder %s117, %s120
      %p126 = scmp.eq.s32.totalorder %s29, 0
      %p127 = por %p125, %p126
      %p128 = scmp.ne.s32.totalorder %s117, %s120
      %p129 = scmp.eq.s32.totalorder %s34, 1
      %p130 = por %p128, %p129
      %p131 = scmp.ne.s32.totalorder %s120, %s121
      %p132 = scmp.eq.s32.totalorder %s34, 0
      %p133 = por %p131, %p132
      %p134 = scmp.ne.s32.totalorder %s120, %s121
      %p135 = scmp.eq.s32.totalorder %s35, 1
      %p136 = por %p134, %p135
      %p138 = scmp.ne.s32.totalorder %s121, %s137
      %p139 = scmp.eq.s32.totalorder %s35, 0
      %p140 = por %p138, %p139
      %s142 = sadd.s32 %s141, 1
      %p145 = scmp.eq.s32.totalorder %s29, 1
      %p146 = scmp.ne.s32.totalorder %s141, %s143
      %p147 = scmp.eq.s32.totalorder %s29, 0
      %p148 = por %p146, %p147
      %p149 = scmp.ne.s32.totalorder %s141, %s143
      %p150 = scmp.eq.s32.totalorder %s34, 1
      %p151 = por %p149, %p150
      %p152 = scmp.ne.s32.totalorder %s143, %s144
      %p153 = scmp.eq.s32.totalorder %s34, 0
      %p154 = por %p152, %p153
      %p155 = scmp.ne.s32.totalorder %s143, %s144
      %p156 = scmp.eq.s32.totalorder %s35, 1
      %p157 = por %p155, %p156
      %p159 = scmp.ne.s32.totalorder %s144, %s158
      %p160 = scmp.eq.s32.totalorder %s35, 0
      %p161 = por %p159, %p160
      %s163 = sadd.s32 %s162, 1
      %p166 = scmp.eq.s32.totalorder %s29, 1
      %p167 = scmp.ne.s32.totalorder %s162, %s164
      %p168 = scmp.eq.s32.totalorder %s29, 0
      %p169 = por %p167, %p168
      %p170 = scmp.ne.s32.totalorder %s162, %s164
      %p171 = scmp.eq.s32.totalorder %s34, 1
      %p172 = por %p170, %p171
      %p173 = scmp.ne.s32.totalorder %s164, %s165
      %p174 = scmp.eq.s32.totalorder %s34, 0
      %p175 = por %p173, %p174
      %p176 = scmp.ne.s32.totalorder %s164, %s165
      %p177 = scmp.eq.s32.totalorder %s35, 1
      %p178 = por %p176, %p177
      %p180 = scmp.ne.s32.totalorder %s165, %s179
      %p181 = scmp.eq.s32.totalorder %s35, 0
      %p182 = por %p180, %p181
      %s184 = sadd.s32 %s183, 1
      %p187 = scmp.eq.s32.totalorder %s29, 1
      %p188 = scmp.ne.s32.totalorder %s183, %s185
      %p189 = scmp.eq.s32.totalorder %s29, 0
      %p190 = por %p188, %p189
      %p191 = scmp.ne.s32.totalorder %s183, %s185
      %p192 = scmp.eq.s32.totalorder %s34, 1
      %p193 = por %p191, %p192
      %p194 = scmp.ne.s32.totalorder %s185, %s186
      %p195 = scmp.eq.s32.totalorder %s34, 0
      %p196 = por %p194, %p195
      %p197 = scmp.ne.s32.totalorder %s185, %s186
      %p198 = scmp.eq.s32.totalorder %s35, 1
      %p199 = por %p197, %p198
      %p201 = scmp.ne.s32.totalorder %s186, %s200
      %p202 = scmp.eq.s32.totalorder %s35, 0
      %p203 = por %p201, %p202
      %s205 = sadd.s32 %s204, 1
      %p208 = scmp.eq.s32.totalorder %s29, 1
      %p209 = scmp.ne.s32.totalorder %s204, %s206
      %p210 = scmp.eq.s32.totalorder %s29, 0
      %p211 = por %p209, %p210
      %p212 = scmp.ne.s32.totalorder %s204, %s206
      %p213 = scmp.eq.s32.totalorder %s34, 1
      %p214 = por %p212, %p213
      %p215 = scmp.ne.s32.totalorder %s206, %s207
      %p216 = scmp.eq.s32.totalorder %s34, 0
      %p217 = por %p215, %p216
      %p218 = scmp.ne.s32.totalorder %s206, %s207
      %p219 = scmp.eq.s32.totalorder %s35, 1
      %p220 = por %p218, %p219
      %p222 = scmp.ne.s32.totalorder %s207, %s221
      %p223 = scmp.eq.s32.totalorder %s35, 0
      %p224 = por %p222, %p223
      %s226 = sadd.s32 %s225, 1
      %p229 = scmp.eq.s32.totalorder %s29, 1
      %p230 = scmp.ne.s32.totalorder %s225, %s227
      %p231 = scmp.eq.s32.totalorder %s29, 0
      %p232 = por %p230, %p231
      %p233 = scmp.ne.s32.totalorder %s225, %s227
      %p234 = scmp.eq.s32.totalorder %s34, 1
      %p235 = por %p233, %p234
      %p236 = scmp.ne.s32.totalorder %s227, %s228
      %p237 = scmp.eq.s32.totalorder %s34, 0
      %p238 = por %p236, %p237
      %p239 = scmp.ne.s32.totalorder %s227, %s228
      %p240 = scmp.eq.s32.totalorder %s35, 1
      %p241 = por %p239, %p240
      %p243 = scmp.ne.s32.totalorder %s228, %s242
      %p244 = scmp.eq.s32.totalorder %s35, 0
      %p245 = por %p243, %p244
      %s247 = sadd.s32 %s246, 1
      %p250 = scmp.eq.s32.totalorder %s29, 1
      %p251 = scmp.ne.s32.totalorder %s246, %s248
      %p252 = scmp.eq.s32.totalorder %s29, 0
      %p253 = por %p251, %p252
      %p254 = scmp.ne.s32.totalorder %s246, %s248
      %p255 = scmp.eq.s32.totalorder %s34, 1
      %p256 = por %p254, %p255
      %p257 = scmp.ne.s32.totalorder %s248, %s249
      %p258 = scmp.eq.s32.totalorder %s34, 0
      %p259 = por %p257, %p258
      %p260 = scmp.ne.s32.totalorder %s248, %s249
      %p261 = scmp.eq.s32.totalorder %s35, 1
      %p262 = por %p260, %p261
      %p264 = scmp.ne.s32.totalorder %s249, %s263
      %p265 = scmp.eq.s32.totalorder %s35, 0
      %p266 = por %p264, %p265
      %s268 = sadd.s32 %s267, 1
      %p271 = scmp.eq.s32.totalorder %s29, 1
      %p272 = scmp.ne.s32.totalorder %s267, %s269
      %p273 = scmp.eq.s32.totalorder %s29, 0
      %p274 = por %p272, %p273
      %p275 = scmp.ne.s32.totalorder %s267, %s269
      %p276 = scmp.eq.s32.totalorder %s34, 1
      %p277 = por %p275, %p276
      %p278 = scmp.ne.s32.totalorder %s269, %s270
      %p279 = scmp.eq.s32.totalorder %s34, 0
      %p280 = por %p278, %p279
      %p281 = scmp.ne.s32.totalorder %s269, %s270
      %p282 = scmp.eq.s32.totalorder %s35, 1
      %p283 = por %p281, %p282
      %p285 = scmp.ne.s32.totalorder %s270, %s284
      %p286 = scmp.eq.s32.totalorder %s35, 0
      %p287 = por %p285, %p286
      %s289 = sadd.s32 %s288, 1
      %p292 = scmp.eq.s32.totalorder %s29, 1
      %p293 = scmp.ne.s32.totalorder %s288, %s290
      %p294 = scmp.eq.s32.totalorder %s29, 0
      %p295 = por %p293, %p294
      %p296 = scmp.ne.s32.totalorder %s288, %s290
      %p297 = scmp.eq.s32.totalorder %s34, 1
      %p298 = por %p296, %p297
      %p299 = scmp.ne.s32.totalorder %s290, %s291
      %p300 = scmp.eq.s32.totalorder %s34, 0
      %p301 = por %p299, %p300
      %p302 = scmp.ne.s32.totalorder %s290, %s291
      %p303 = scmp.eq.s32.totalorder %s35, 1
      %p304 = por %p302, %p303
      %p306 = scmp.ne.s32.totalorder %s291, %s305
      %p307 = scmp.eq.s32.totalorder %s35, 0
      %p308 = por %p306, %p307
      %s310 = sadd.s32 %s309, 1
      %p313 = scmp.eq.s32.totalorder %s29, 1
      %p314 = scmp.ne.s32.totalorder %s309, %s311
      %p315 = scmp.eq.s32.totalorder %s29, 0
      %p316 = por %p314, %p315
      %p317 = scmp.ne.s32.totalorder %s309, %s311
      %p318 = scmp.eq.s32.totalorder %s34, 1
      %p319 = por %p317, %p318
      %p320 = scmp.ne.s32.totalorder %s311, %s312
      %p321 = scmp.eq.s32.totalorder %s34, 0
      %p322 = por %p320, %p321
      %p323 = scmp.ne.s32.totalorder %s311, %s312
      %p324 = scmp.eq.s32.totalorder %s35, 1
      %p325 = por %p323, %p324
      %p327 = scmp.ne.s32.totalorder %s312, %s326
      %p328 = scmp.eq.s32.totalorder %s35, 0
      %p329 = por %p327, %p328
      %s331 = sadd.s32 %s330, 1
      %p334 = scmp.eq.s32.totalorder %s29, 1
      %p335 = scmp.ne.s32.totalorder %s330, %s332
      %p336 = scmp.eq.s32.totalorder %s29, 0
      %p337 = por %p335, %p336
      %p338 = scmp.ne.s32.totalorder %s330, %s332
      %p339 = scmp.eq.s32.totalorder %s34, 1
      %p340 = por %p338, %p339
      %p341 = scmp.ne.s32.totalorder %s332, %s333
      %p342 = scmp.eq.s32.totalorder %s34, 0
      %p343 = por %p341, %p342
      %p344 = scmp.ne.s32.totalorder %s332, %s333
      %p345 = scmp.eq.s32.totalorder %s35, 1
      %p346 = por %p344, %p345
      %p348 = scmp.ne.s32.totalorder %s333, %s347
      %p349 = scmp.eq.s32.totalorder %s35, 0
      %p350 = por %p348, %p349
      %s352 = sadd.s32 %s351, 1
      %p355 = scmp.eq.s32.totalorder %s29, 1
      %p356 = scmp.ne.s32.totalorder %s351, %s353
      %p357 = scmp.eq.s32.totalorder %s29, 0
      %p358 = por %p356, %p357
      %p359 = scmp.ne.s32.totalorder %s351, %s353
      %p360 = scmp.eq.s32.totalorder %s34, 1
      %p361 = por %p359, %p360
      %p362 = scmp.ne.s32.totalorder %s353, %s354
      %p363 = scmp.eq.s32.totalorder %s34, 0
      %p364 = por %p362, %p363
      %p365 = scmp.ne.s32.totalorder %s353, %s354
      %p366 = scmp.eq.s32.totalorder %s35, 1
      %p367 = por %p365, %p366
      %p369 = scmp.ne.s32.totalorder %s354, %s368
      %p370 = scmp.eq.s32.totalorder %s35, 0
      %p371 = por %p369, %p370
      %s373 = sadd.s32 %s372, 1
      %p376 = scmp.eq.s32.totalorder %s29, 1
      %p377 = scmp.ne.s32.totalorder %s372, %s374
      %p378 = scmp.eq.s32.totalorder %s29, 0
      %p379 = por %p377, %p378
      %p380 = scmp.ne.s32.totalorder %s372, %s374
      %p381 = scmp.eq.s32.totalorder %s34, 1
      %p382 = por %p380, %p381
      %p383 = scmp.ne.s32.totalorder %s374, %s375
      %p384 = scmp.eq.s32.totalorder %s34, 0
      %p385 = por %p383, %p384
      %p386 = scmp.ne.s32.totalorder %s374, %s375
      %p387 = scmp.eq.s32.totalorder %s35, 1
      %p388 = por %p386, %p387
      %p390 = scmp.ne.s32.totalorder %s375, %s389
      %p391 = scmp.eq.s32.totalorder %s35, 0
      %p392 = por %p390, %p391
      %s394 = sadd.s32 %s393, 1
      %p397 = scmp.eq.s32.totalorder %s29, 1
      %p398 = scmp.ne.s32.totalorder %s393, %s395
      %p399 = scmp.eq.s32.totalorder %s29, 0
      %p400 = por %p398, %p399
      %p401 = scmp.ne.s32.totalorder %s393, %s395
      %p402 = scmp.eq.s32.totalorder %s34, 1
      %p403 = por %p401, %p402
      %p404 = scmp.ne.s32.totalorder %s395, %s396
      %p405 = scmp.eq.s32.totalorder %s34, 0
      %p406 = por %p404, %p405
      %p407 = scmp.ne.s32.totalorder %s395, %s396
      %p408 = scmp.eq.s32.totalorder %s35, 1
      %p409 = por %p407, %p408
      %p411 = scmp.ne.s32.totalorder %s396, %s410
      %p412 = scmp.eq.s32.totalorder %s35, 0
      %p413 = por %p411, %p412
      %s415 = sadd.s32 %s414, 1
      %p418 = scmp.eq.s32.totalorder %s29, 1
      %p419 = scmp.ne.s32.totalorder %s414, %s416
      %p420 = scmp.eq.s32.totalorder %s29, 0
      %p421 = por %p419, %p420
      %p422 = scmp.ne.s32.totalorder %s414, %s416
      %p423 = scmp.eq.s32.totalorder %s34, 1
      %p424 = por %p422, %p423
      %p425 = scmp.ne.s32.totalorder %s416, %s417
      %p426 = scmp.eq.s32.totalorder %s34, 0
      %p427 = por %p425, %p426
      %p428 = scmp.ne.s32.totalorder %s416, %s417
      %p429 = scmp.eq.s32.totalorder %s35, 1
      %p430 = por %p428, %p429
      %p432 = scmp.ne.s32.totalorder %s417, %s431
      %p433 = scmp.eq.s32.totalorder %s35, 0
      %p434 = por %p432, %p433
      %s436 = sadd.s32 %s435, 1
      %p439 = scmp.eq.s32.totalorder %s29, 1
      %p440 = scmp.ne.s32.totalorder %s435, %s437
      %p441 = scmp.eq.s32.totalorder %s29, 0
      %p442 = por %p440, %p441
      %p443 = scmp.ne.s32.totalorder %s435, %s437
      %p444 = scmp.eq.s32.totalorder %s34, 1
      %p445 = por %p443, %p444
      %p446 = scmp.ne.s32.totalorder %s437, %s438
      %p447 = scmp.eq.s32.totalorder %s34, 0
      %p448 = por %p446, %p447
      %p449 = scmp.ne.s32.totalorder %s437, %s438
      %p450 = scmp.eq.s32.totalorder %s35, 1
      %p451 = por %p449, %p450
      %p453 = scmp.ne.s32.totalorder %s438, %s452
      %p454 = scmp.eq.s32.totalorder %s35, 0
      %p455 = por %p453, %p454
      %s457 = sadd.s32 %s456, 1
      %p460 = scmp.eq.s32.totalorder %s29, 1
      %p461 = scmp.ne.s32.totalorder %s456, %s458
      %p462 = scmp.eq.s32.totalorder %s29, 0
      %p463 = por %p461, %p462
      %p464 = scmp.ne.s32.totalorder %s456, %s458
      %p465 = scmp.eq.s32.totalorder %s34, 1
      %p466 = por %p464, %p465
      %p467 = scmp.ne.s32.totalorder %s458, %s459
      %p468 = scmp.eq.s32.totalorder %s34, 0
      %p469 = por %p467, %p468
      %p470 = scmp.ne.s32.totalorder %s458, %s459
      %p471 = scmp.eq.s32.totalorder %s35, 1
      %p472 = por %p470, %p471
      %p474 = scmp.ne.s32.totalorder %s459, %s473
      %p475 = scmp.eq.s32.totalorder %s35, 0
      %p476 = por %p474, %p475
      %s478 = sadd.s32 %s477, 1
      %p481 = scmp.eq.s32.totalorder %s29, 1
      %p482 = scmp.ne.s32.totalorder %s477, %s479
      %p483 = scmp.eq.s32.totalorder %s29, 0
      %p484 = por %p482, %p483
      %p485 = scmp.ne.s32.totalorder %s477, %s479
      %p486 = scmp.eq.s32.totalorder %s34, 1
      %p487 = por %p485, %p486
      %p488 = scmp.ne.s32.totalorder %s479, %s480
      %p489 = scmp.eq.s32.totalorder %s34, 0
      %p490 = por %p488, %p489
      %p491 = scmp.ne.s32.totalorder %s479, %s480
      %p492 = scmp.eq.s32.totalorder %s35, 1
      %p493 = por %p491, %p492
      %p495 = scmp.ne.s32.totalorder %s480, %s494
      %p496 = scmp.eq.s32.totalorder %s35, 0
      %p497 = por %p495, %p496
      %s499 = sadd.s32 %s498, 1
      %p502 = scmp.eq.s32.totalorder %s29, 1
      %p503 = scmp.ne.s32.totalorder %s498, %s500
      %p504 = scmp.eq.s32.totalorder %s29, 0
      %p505 = por %p503, %p504
      %p506 = scmp.ne.s32.totalorder %s498, %s500
      %p507 = scmp.eq.s32.totalorder %s34, 1
      %p508 = por %p506, %p507
      %p509 = scmp.ne.s32.totalorder %s500, %s501
      %p510 = scmp.eq.s32.totalorder %s34, 0
      %p511 = por %p509, %p510
      %p512 = scmp.ne.s32.totalorder %s500, %s501
      %p513 = scmp.eq.s32.totalorder %s35, 1
      %p514 = por %p512, %p513
      %p516 = scmp.ne.s32.totalorder %s501, %s515
      %p517 = scmp.eq.s32.totalorder %s35, 0
      %p518 = por %p516, %p517
      %s520 = sadd.s32 %s519, 1
      %p523 = scmp.eq.s32.totalorder %s29, 1
      %p524 = scmp.ne.s32.totalorder %s519, %s521
      %p525 = scmp.eq.s32.totalorder %s29, 0
      %p526 = por %p524, %p525
      %p527 = scmp.ne.s32.totalorder %s519, %s521
      %p528 = scmp.eq.s32.totalorder %s34, 1
      %p529 = por %p527, %p528
      %p530 = scmp.ne.s32.totalorder %s521, %s522
      %p531 = scmp.eq.s32.totalorder %s34, 0
      %p532 = por %p530, %p531
      %p533 = scmp.ne.s32.totalorder %s521, %s522
      %p534 = scmp.eq.s32.totalorder %s35, 1
      %p535 = por %p533, %p534
      %p537 = scmp.ne.s32.totalorder %s522, %s536
      %p538 = scmp.eq.s32.totalorder %s35, 0
      %p539 = por %p537, %p538
      %p540 = scmp.le.s32.totalorder 1, %s29
      %p541 = scmp.lt.s32.totalorder %s29, 3
      %p542 = pnand %p540, %p541
      %p543 = pneg %p542
      // Predicated region
      $region9: #{gcngat_forward.1} parent=5 // pred_check
        _
      $region10: #{gcngat_forward.1} parent=5 // pred_check_branch
        %545 = sbr.rel (%p542) target = $region12
      $region11: #{gcngat_forward.1} parent=5 // pred_region
        %s546 = ssub.s32 %s29, 1
        // Predicated region
        $region13: #{gcngat_forward.1} parent=11 // pred_check
          %p547 = pneg %p154
        $region14: #{gcngat_forward.1} parent=11 // pred_check_branch
          %549 = sbr.rel (%p547) target = $region16
        $region15: #{gcngat_forward.1} parent=11 // pred_region
          _
        $region16: #{gcngat_forward.1} parent=11 // pred_fallthru
          _
        // Predicated region
        $region17: #{gcngat_forward.1} parent=11 // pred_check
          %p550 = pneg %p175
        $region18: #{gcngat_forward.1} parent=11 // pred_check_branch
          %552 = sbr.rel (%p550) target = $region20
        $region19: #{gcngat_forward.1} parent=11 // pred_region
          _
        $region20: #{gcngat_forward.1} parent=11 // pred_fallthru
          _
        // Predicated region
        $region21: #{gcngat_forward.1} parent=11 // pred_check
          %p553 = pneg %p196
        $region22: #{gcngat_forward.1} parent=11 // pred_check_branch
          %555 = sbr.rel (%p553) target = $region24
        $region23: #{gcngat_forward.1} parent=11 // pred_region
          _
        $region24: #{gcngat_forward.1} parent=11 // pred_fallthru
          _
        // Predicated region
        $region25: #{gcngat_forward.1} parent=11 // pred_check
          %p556 = pneg %p217
        $region26: #{gcngat_forward.1} parent=11 // pred_check_branch
          %558 = sbr.rel (%p556) target = $region28
        $region27: #{gcngat_forward.1} parent=11 // pred_region
          _
        $region28: #{gcngat_forward.1} parent=11 // pred_fallthru
          _
        // Predicated region
        $region29: #{gcngat_forward.1} parent=11 // pred_check
          %p559 = pneg %p238
        $region30: #{gcngat_forward.1} parent=11 // pred_check_branch
          %561 = sbr.rel (%p559) target = $region32
        $region31: #{gcngat_forward.1} parent=11 // pred_region
          _
        $region32: #{gcngat_forward.1} parent=11 // pred_fallthru
          _
        // Predicated region
        $region33: #{gcngat_forward.1} parent=11 // pred_check
          %p562 = pneg %p259
        $region34: #{gcngat_forward.1} parent=11 // pred_check_branch
          %564 = sbr.rel (%p562) target = $region36
        $region35: #{gcngat_forward.1} parent=11 // pred_region
          _
        $region36: #{gcngat_forward.1} parent=11 // pred_fallthru
          _
        // Predicated region
        $region37: #{gcngat_forward.1} parent=11 // pred_check
          %p565 = pneg %p280
        $region38: #{gcngat_forward.1} parent=11 // pred_check_branch
          %567 = sbr.rel (%p565) target = $region40
        $region39: #{gcngat_forward.1} parent=11 // pred_region
          _
        $region40: #{gcngat_forward.1} parent=11 // pred_fallthru
          _
        // Predicated region
        $region41: #{gcngat_forward.1} parent=11 // pred_check
          %p568 = pneg %p301
        $region42: #{gcngat_forward.1} parent=11 // pred_check_branch
          %570 = sbr.rel (%p568) target = $region44
        $region43: #{gcngat_forward.1} parent=11 // pred_region
          _
        $region44: #{gcngat_forward.1} parent=11 // pred_fallthru
          _
        // Predicated region
        $region45: #{gcngat_forward.1} parent=11 // pred_check
          %p571 = pneg %p322
        $region46: #{gcngat_forward.1} parent=11 // pred_check_branch
          %573 = sbr.rel (%p571) target = $region48
        $region47: #{gcngat_forward.1} parent=11 // pred_region
          _
        $region48: #{gcngat_forward.1} parent=11 // pred_fallthru
          _
        // Predicated region
        $region49: #{gcngat_forward.1} parent=11 // pred_check
          %p574 = pneg %p343
        $region50: #{gcngat_forward.1} parent=11 // pred_check_branch
          %576 = sbr.rel (%p574) target = $region52
        $region51: #{gcngat_forward.1} parent=11 // pred_region
          _
        $region52: #{gcngat_forward.1} parent=11 // pred_fallthru
          _
        // Predicated region
        $region53: #{gcngat_forward.1} parent=11 // pred_check
          %p577 = pneg %p364
        $region54: #{gcngat_forward.1} parent=11 // pred_check_branch
          %579 = sbr.rel (%p577) target = $region56
        $region55: #{gcngat_forward.1} parent=11 // pred_region
          _
        $region56: #{gcngat_forward.1} parent=11 // pred_fallthru
          _
        // Predicated region
        $region57: #{gcngat_forward.1} parent=11 // pred_check
          %p580 = pneg %p385
        $region58: #{gcngat_forward.1} parent=11 // pred_check_branch
          %582 = sbr.rel (%p580) target = $region60
        $region59: #{gcngat_forward.1} parent=11 // pred_region
          _
        $region60: #{gcngat_forward.1} parent=11 // pred_fallthru
          _
        // Predicated region
        $region61: #{gcngat_forward.1} parent=11 // pred_check
          %p583 = pneg %p406
        $region62: #{gcngat_forward.1} parent=11 // pred_check_branch
          %585 = sbr.rel (%p583) target = $region64
        $region63: #{gcngat_forward.1} parent=11 // pred_region
          _
        $region64: #{gcngat_forward.1} parent=11 // pred_fallthru
          _
        // Predicated region
        $region65: #{gcngat_forward.1} parent=11 // pred_check
          %p586 = pneg %p427
        $region66: #{gcngat_forward.1} parent=11 // pred_check_branch
          %588 = sbr.rel (%p586) target = $region68
        $region67: #{gcngat_forward.1} parent=11 // pred_region
          _
        $region68: #{gcngat_forward.1} parent=11 // pred_fallthru
          _
        // Predicated region
        $region69: #{gcngat_forward.1} parent=11 // pred_check
          %p589 = pneg %p448
        $region70: #{gcngat_forward.1} parent=11 // pred_check_branch
          %591 = sbr.rel (%p589) target = $region72
        $region71: #{gcngat_forward.1} parent=11 // pred_region
          _
        $region72: #{gcngat_forward.1} parent=11 // pred_fallthru
          _
        // Predicated region
        $region73: #{gcngat_forward.1} parent=11 // pred_check
          %p592 = pneg %p469
        $region74: #{gcngat_forward.1} parent=11 // pred_check_branch
          %594 = sbr.rel (%p592) target = $region76
        $region75: #{gcngat_forward.1} parent=11 // pred_region
          _
        $region76: #{gcngat_forward.1} parent=11 // pred_fallthru
          _
        // Predicated region
        $region77: #{gcngat_forward.1} parent=11 // pred_check
          %p595 = pneg %p490
        $region78: #{gcngat_forward.1} parent=11 // pred_check_branch
          %597 = sbr.rel (%p595) target = $region80
        $region79: #{gcngat_forward.1} parent=11 // pred_region
          _
        $region80: #{gcngat_forward.1} parent=11 // pred_fallthru
          _
        // Predicated region
        $region81: #{gcngat_forward.1} parent=11 // pred_check
          %p598 = pneg %p511
        $region82: #{gcngat_forward.1} parent=11 // pred_check_branch
          %600 = sbr.rel (%p598) target = $region84
        $region83: #{gcngat_forward.1} parent=11 // pred_region
          _
        $region84: #{gcngat_forward.1} parent=11 // pred_fallthru
          _
      $region12: #{gcngat_forward.1} parent=5 // pred_fallthru
        _
      %p601 = scmp.lt.s32.totalorder %s29, 2
      // Predicated region
      $region85: #{gcngat_forward.1} parent=5 // pred_check
        %p602 = pneg %p601
      $region86: #{gcngat_forward.1} parent=5 // pred_check_branch
        %604 = sbr.rel (%p602) target = $region88
      $region87: #{gcngat_forward.1} parent=5 // pred_region
        // Predicated region
        $region89: #{gcngat_forward.1} parent=87 // pred_check
          %p605 = pneg %p49
        $region90: #{gcngat_forward.1} parent=87 // pred_check_branch
          %607 = sbr.rel (%p605) target = $region92
        $region91: #{gcngat_forward.1} parent=87 // pred_region
          %p608 = scmp.lt.s32.totalorder %s29, 1
          %s609 = scalar_select %p608, %s29, 1
          %s610 = smul.addr %s609, 4
          %s611 = smul.addr %s610, 8
          %s612 = scalar_lea.vmem %s0, %s611
        $region92: #{gcngat_forward.1} parent=87 // pred_fallthru
          _
        // Predicated region
        $region93: #{gcngat_forward.1} parent=87 // pred_check
          %p613 = pneg %p75
        $region94: #{gcngat_forward.1} parent=87 // pred_check_branch
          %615 = sbr.rel (%p613) target = $region96
        $region95: #{gcngat_forward.1} parent=87 // pred_region
          %p616 = scmp.lt.s32.totalorder %s29, 1
          %s617 = scalar_select %p616, %s29, 1
          %s618 = smul.addr %s617, 4
          %s619 = smul.addr %s618, 4
          %s620 = scalar_lea.vmem %s1, %s619
        $region96: #{gcngat_forward.1} parent=87 // pred_fallthru
          _
        // Predicated region
        $region97: #{gcngat_forward.1} parent=87 // pred_check
          %p621 = pneg %p101
        $region98: #{gcngat_forward.1} parent=87 // pred_check_branch
          %623 = sbr.rel (%p621) target = $region100
        $region99: #{gcngat_forward.1} parent=87 // pred_region
          %p624 = scmp.lt.s32.totalorder %s29, 1
          %s625 = scalar_select %p624, %s29, 1
          %s626 = smul.addr %s625, 4
          %s627 = smul.addr %s626, 8
          %s628 = scalar_lea.vmem %s2, %s627
        $region100: #{gcngat_forward.1} parent=87 // pred_fallthru
          _
        // Predicated region
        $region101: #{gcngat_forward.1} parent=87 // pred_check
          %p629 = pneg %p127
        $region102: #{gcngat_forward.1} parent=87 // pred_check_branch
          %631 = sbr.rel (%p629) target = $region104
        $region103: #{gcngat_forward.1} parent=87 // pred_region
          %p632 = scmp.lt.s32.totalorder %s29, 1
          %s633 = scalar_select %p632, %s29, 1
          %s634 = smul.addr %s633, 2
          %s635 = scalar_lea.vmem %s3, %s634
        $region104: #{gcngat_forward.1} parent=87 // pred_fallthru
          _
      $region88: #{gcngat_forward.1} parent=5 // pred_fallthru
        _
      %p636 = scmp.le.s32.totalorder 1, %s29
      %p637 = scmp.lt.s32.totalorder %s29, 3
      %p638 = pnand %p636, %p637
      %p639 = pneg %p638
      // Predicated region
      $region105: #{gcngat_forward.1} parent=5 // pred_check
        _
      $region106: #{gcngat_forward.1} parent=5 // pred_check_branch
        %641 = sbr.rel (%p638) target = $region108
      $region107: #{gcngat_forward.1} parent=5 // pred_region
        %s642 = ssub.s32 %s29, 1
        %p643 = scmp.lt.s32.totalorder %s34, 1
        %s644 = scalar_select %p643, %s34, 1
        %s645 = smul.addr %s644, 4
        %s646 = smul.addr %s645, 8
        %s647 = scalar_lea.vmem %s0, %s646
        %p648 = pneg %p55
        %p649 = pneg %p52
        %p650 = scmp.lt.s32.totalorder %s34, 1
        %s651 = scalar_select %p650, %s34, 1
        %s652 = smul.addr %s651, 4
        %s653 = smul.addr %s652, 4
        %s654 = scalar_lea.vmem %s1, %s653
        %p655 = pneg %p81
        %p656 = pneg %p78
        %p657 = scmp.lt.s32.totalorder %s34, 1
        %s658 = scalar_select %p657, %s34, 1
        %s659 = smul.addr %s658, 4
        %s660 = smul.addr %s659, 8
        %s661 = scalar_lea.vmem %s2, %s660
        %p662 = pneg %p107
        %p663 = pneg %p104
        %p664 = scmp.lt.s32.totalorder %s34, 1
        %s665 = scalar_select %p664, %s34, 1
        %s666 = smul.addr %s665, 2
        %s667 = scalar_lea.vmem %s3, %s666
        %p668 = pneg %p133
        %p669 = pneg %p130
        %p670 = pneg %p154
        %p671 = pneg %p151
        %p672 = pneg %p175
        %p673 = pneg %p172
        %p674 = pneg %p196
        %p675 = pneg %p193
        %p676 = pneg %p217
        %p677 = pneg %p214
        %p678 = pneg %p238
        %p679 = pneg %p235
        %p680 = pneg %p259
        %p681 = pneg %p256
        %p682 = pneg %p280
        %p683 = pneg %p277
        %p684 = pneg %p301
        %p685 = pneg %p298
        %p686 = pneg %p322
        %p687 = pneg %p319
        %p688 = pneg %p343
        %p689 = pneg %p340
        %p690 = pneg %p364
        %p691 = pneg %p361
        %p692 = pneg %p385
        %p693 = pneg %p382
        %p694 = pneg %p406
        %p695 = pneg %p403
        %p696 = pneg %p427
        %p697 = pneg %p424
        %p698 = pneg %p448
        %p699 = pneg %p445
        %p700 = pneg %p469
        %p701 = pneg %p466
        %p702 = pneg %p490
        %p703 = pneg %p487
        %p704 = pneg %p511
        %p705 = pneg %p508
        %p706 = pneg %p532
        %p707 = pneg %p529
        %p708 = scmp.lt.s32.totalorder %s34, 1
        %s709 = scalar_select %p708, %s34, 1
        %s710 = smul.addr %s709, 4
        %s711 = smul.addr %s710, 8
        %s712 = scalar_lea.vmem %s0, %s711
        %p713 = scmp.lt.s32.totalorder %s34, 1
        %s714 = scalar_select %p713, %s34, 1
        %s715 = smul.addr %s714, 4
        %s716 = smul.addr %s715, 4
        %s717 = scalar_lea.vmem %s1, %s716
        %p718 = scmp.lt.s32.totalorder %s34, 1
        %s719 = scalar_select %p718, %s34, 1
        %s720 = smul.addr %s719, 4
        %s721 = smul.addr %s720, 8
        %s722 = scalar_lea.vmem %s2, %s721
        %p723 = scmp.lt.s32.totalorder %s34, 1
        %s724 = scalar_select %p723, %s34, 1
        %s725 = smul.addr %s724, 2
        %s726 = scalar_lea.vmem %s3, %s725
        %p727 = scmp.eq.s32.totalorder %s34, 0
        // Predicated region
        $region109: #{gcngat_forward.1} parent=107 // pred_check
          %p728 = pneg %p727
        $region110: #{gcngat_forward.1} parent=107 // pred_check_branch
          %730 = sbr.rel (%p728) target = $region112
        $region111: #{gcngat_forward.1} parent=107 // pred_region
          %vm731 = vcmask 9216
          %732 = vst.msk [vmem:[#allocation3] sm:$0x3] %vm731, 0.0
        $region112: #{gcngat_forward.1} parent=107 // pred_fallthru
          _
        %v733 = vld [vmem:[%s717] sm:$0xf]
        %v734 = vld [vmem:[%s717 + $0x4] sm:$0xf]
        %v735 = vld [vmem:[%s717 + $0x8] sm:$0xf]
        %v736 = vld [vmem:[%s717 + $0xc] sm:$0xf]
        %v737 = vunpack.c.l.bf16 %v733
        %v738 = vunpack.c.l.bf16 %v734
        %v739 = vunpack.c.l.bf16 %v735
        %v740 = vunpack.c.l.bf16 %v736
        %v741 = vld [vmem:[%s722] sm:$0xff]
        %v742 = vld [vmem:[%s722 + $0x8] sm:$0xff]
        %v743 = vld [vmem:[%s722 + $0x10] sm:$0xff]
        %v744 = vld [vmem:[%s722 + $0x18] sm:$0xff]
        %v745 = vld [vmem:[%s712] sm:$0xff]
        %v746 = vld [vmem:[%s712 + $0x8] sm:$0xff]
        %v747 = vld [vmem:[%s712 + $0x10] sm:$0xff]
        %v748 = vld [vmem:[%s712 + $0x18] sm:$0xff]
        %v749 = vld [vmem:[%s4] sm:$0x1]
        %751 = vset.pattern.permute.xlu0 0
        %752 = vperm.xlu0 %751, %v745
        %v753 = vpop.permute.xlu0 %752
        %756 = vset.pattern.permute.xlu0 0
        %757 = vperm.xlu0 %756, %v746
        %v758 = vpop.permute.xlu0 %757
        %761 = vset.pattern.permute.xlu0 0
        %762 = vperm.xlu0 %761, %v747
        %v763 = vpop.permute.xlu0 %762
        %766 = vset.pattern.permute.xlu0 0
        %767 = vperm.xlu0 %766, %v748
        %v768 = vpop.permute.xlu0 %767
        %v771 = vperm.slane %v749, 0
        %v773 = vmul.f32 %v753, %v771
        %v774 = vmul.f32 %v758, %v771
        %v775 = vmul.f32 %v763, %v771
        %v776 = vmul.f32 %v768, %v771
        %778 = vset.pattern.permute.xlu0 0
        %779 = vperm.xlu0 %778, %v741
        %v780 = vpop.permute.xlu0 %779
        %783 = vset.pattern.permute.xlu0 0
        %784 = vperm.xlu0 %783, %v742
        %v785 = vpop.permute.xlu0 %784
        %788 = vset.pattern.permute.xlu0 0
        %789 = vperm.xlu0 %788, %v743
        %v790 = vpop.permute.xlu0 %789
        %793 = vset.pattern.permute.xlu0 0
        %794 = vperm.xlu0 %793, %v744
        %v795 = vpop.permute.xlu0 %794
        %v797 = vmul.f32 %v780, %v773
        %v798 = vmul.f32 %v785, %v774
        %v799 = vmul.f32 %v790, %v775
        %v800 = vmul.f32 %v795, %v776
        %vm801 = vcmask 261120
        %v803 = vsel %vm801, %v737, 0
        %v806 = vsel %vm801, %v738, 0
        %v809 = vsel %vm801, %v739, 0
        %v812 = vsel %vm801, %v740, 0
        %814 = vmatpush.msra.mxu0 0.0
        %815 = vmatpush.msra.mxu0 0.0
        %816 = vmatpush.msra.mxu0 0.0
        %817 = vmatpush.msra.mxu0 0.0
        %818 = vmatpush.msra.mxu0 0.0
        %819 = vmatpush.msra.mxu0 0.0
        %820 = vmatpush.msra.mxu0 0.0
        %821 = vmatpush.msra.mxu0 0.0
        %822 = vmatpush.msra.mxu0 0.0
        %823 = vmatpush.msra.mxu0 0.0
        %824 = vmatpush.msra.mxu0 0.0
        %825 = vmatpush.msra.mxu0 0.0
        %826 = vmatpush.msra.mxu0 %v800
        %827 = vmatpush.msra.mxu0 %v799
        %828 = vmatpush.msra.mxu0 %v798
        %829 = vmatpush.msra.mxu0 %v797
        %830 = vmatmul.f32.gmra.mxu0 %v803
        %v831 = vpop.f32.mrf.mxu0
        %v832 = vadd.f32 0.0, %v831
        %833 = vmatmul.f32.gmra.mxu0 %v806
        %v834 = vpop.f32.mrf.mxu0
        %v835 = vadd.f32 0.0, %v834
        %836 = vmatmul.f32.gmra.mxu0 %v809
        %v837 = vpop.f32.mrf.mxu0
        %v838 = vadd.f32 0.0, %v837
        %839 = vmatmul.f32.gmra.mxu0 %v812
        %v840 = vpop.f32.mrf.mxu0
        %v841 = vadd.f32 0.0, %v840
        %842 = vdwg.mxu0
        %v843 = vmul.f32 %v780, %v832
        %v844 = vmul.f32 %v785, %v835
        %v845 = vmul.f32 %v790, %v838
        %v846 = vmul.f32 %v795, %v841
        %v847 = vld [vmem:[%s5] sm:$0x1]
        %v849 = vperm.slane %v847, 0
        %v851 = vadd.f32 %v843, %v849
        %v852 = vadd.f32 %v844, %v849
        %v853 = vadd.f32 %v845, %v849
        %v854 = vadd.f32 %v846, %v849
        %v855 = vld [vmem:[%s6] sm:$0xff]
        %v856 = vld [vmem:[%s6 + $0x8] sm:$0xff]
        %v857 = vld [vmem:[%s6 + $0x10] sm:$0xff]
        %v858 = vld [vmem:[%s6 + $0x18] sm:$0xff]
        %v859 = vld [vmem:[%s6 + $0x20] sm:$0xff]
        %v860 = vld [vmem:[%s6 + $0x28] sm:$0xff]
        %v861 = vld [vmem:[%s6 + $0x30] sm:$0xff]
        %v862 = vld [vmem:[%s6 + $0x38] sm:$0xff]
        %vm863 = vcmask 523264
        %v865 = vsel %vm863, %v851, 0
        %v868 = vsel %vm863, %v852, 0
        %v871 = vsel %vm863, %v853, 0
        %v874 = vsel %vm863, %v854, 0
        %876 = vmatpush.msra.mxu0 0.0
        %877 = vmatpush.msra.mxu0 0.0
        %878 = vmatpush.msra.mxu0 0.0
        %879 = vmatpush.msra.mxu0 0.0
        %880 = vmatpush.msra.mxu0 0.0
        %881 = vmatpush.msra.mxu0 0.0
        %882 = vmatpush.msra.mxu0 0.0
        %883 = vmatpush.msra.mxu0 0.0
        %884 = vmatpush.msra.mxu0 %v862
        %885 = vmatpush.msra.mxu0 %v861
        %886 = vmatpush.msra.mxu0 %v860
        %887 = vmatpush.msra.mxu0 %v859
        %888 = vmatpush.msra.mxu0 %v858
        %889 = vmatpush.msra.mxu0 %v857
        %890 = vmatpush.msra.mxu0 %v856
        %891 = vmatpush.msra.mxu0 %v855
        %892 = vmatmul.f32.gmra.mxu0 %v865
        %v893 = vpop.f32.mrf.mxu0
        %v894 = vadd.f32 0.0, %v893
        %895 = vmatmul.f32.gmra.mxu0 %v868
        %v896 = vpop.f32.mrf.mxu0
        %v897 = vadd.f32 0.0, %v896
        %898 = vmatmul.f32.gmra.mxu0 %v871
        %v899 = vpop.f32.mrf.mxu0
        %v900 = vadd.f32 0.0, %v899
        %901 = vmatmul.f32.gmra.mxu0 %v874
        %v902 = vpop.f32.mrf.mxu0
        %v903 = vadd.f32 0.0, %v902
        %904 = vdwg.mxu0
        %v905 = vld [vmem:[%s8] sm:$0x1]
        %v907 = vperm.slane %v905, 0
        %v909 = vmul.f32 %v894, %v907
        %v910 = vmul.f32 %v897, %v907
        %v911 = vmul.f32 %v900, %v907
        %v912 = vmul.f32 %v903, %v907
        %v913 = vsel %vm863, %v909, 0.0
        %914 = vadd.xlane.f32.xlu0 %v913
        %v915 = vpop.xlane.xlu0 %914
        %v916 = vsel %vm863, %v910, 0.0
        %917 = vadd.xlane.f32.xlu0 %v916
        %v918 = vpop.xlane.xlu0 %917
        %v919 = vsel %vm863, %v911, 0.0
        %920 = vadd.xlane.f32.xlu0 %v919
        %v921 = vpop.xlane.xlu0 %920
        %v922 = vsel %vm863, %v912, 0.0
        %923 = vadd.xlane.f32.xlu0 %v922
        %v924 = vpop.xlane.xlu0 %923
        %v925 = vld [vmem:[%s7] sm:$0x1]
        %v927 = vsel %vm863, %v925, 0
        %v930 = vsel %vm863, %v894, 0
        %v933 = vsel %vm863, %v897, 0
        %v936 = vsel %vm863, %v900, 0
        %v939 = vsel %vm863, %v903, 0
        %941 = vmatpush.xpose.msra.mxu0 0.0
        %942 = vmatpush.xpose.msra.mxu0 0.0
        %943 = vmatpush.xpose.msra.mxu0 0.0
        %944 = vmatpush.xpose.msra.mxu0 0.0
        %945 = vmatpush.xpose.msra.mxu0 0.0
        %946 = vmatpush.xpose.msra.mxu0 0.0
        %947 = vmatpush.xpose.msra.mxu0 0.0
        %948 = vmatpush.xpose.msra.mxu0 0.0
        %949 = vmatpush.xpose.msra.mxu0 0.0
        %950 = vmatpush.xpose.msra.mxu0 0.0
        %951 = vmatpush.xpose.msra.mxu0 0.0
        %952 = vmatpush.xpose.msra.mxu0 0.0
        %953 = vmatpush.xpose.msra.mxu0 %v939
        %954 = vmatpush.xpose.msra.mxu0 %v936
        %955 = vmatpush.xpose.msra.mxu0 %v933
        %956 = vmatpush.xpose.msra.mxu0 %v930
        %957 = vmatmul.f32.gmra.mxu0 %v927
        %v958 = vpop.f32.mrf.mxu0
        %v959 = vadd.f32 0.0, %v958
        %960 = vdwg.mxu0
        %v961 = vperm.slane %v959, 0
        %v962 = vadd.f32 %v915, %v961
        %v963 = vadd.f32 %v918, %v961
        %v964 = vadd.f32 %v921, %v961
        %v965 = vadd.f32 %v924, %v961
        %vm966 = vcmp.ge.f32.partialorder %v962, 0.0
        %vm967 = vcmp.ge.f32.partialorder %v963, 0.0
        %vm968 = vcmp.ge.f32.partialorder %v964, 0.0
        %vm969 = vcmp.ge.f32.partialorder %v965, 0.0
        %v970 = vmul.f32 %v962, 0.2
        %v971 = vmul.f32 %v963, 0.2
        %v972 = vmul.f32 %v964, 0.2
        %v973 = vmul.f32 %v965, 0.2
        %v974 = vsel %vm966, %v962, %v970
        %v975 = vsel %vm967, %v963, %v971
        %v976 = vsel %vm968, %v964, %v972
        %v977 = vsel %vm969, %v965, %v973
        %vm978 = vcmp.gt.f32.partialorder %v737, 0.0
        %vm979 = vcmp.gt.f32.partialorder %v738, 0.0
        %vm980 = vcmp.gt.f32.partialorder %v739, 0.0
        %vm981 = vcmp.gt.f32.partialorder %v740, 0.0
        %v982 = vsel %vm978, %v974, -1e+30
        %v983 = vsel %vm979, %v975, -1e+30
        %v984 = vsel %vm980, %v976, -1e+30
        %v985 = vsel %vm981, %v977, -1e+30
        %v986 = vsel %vm801, %v982, -inf
        %987 = vmax.xlane.f32.xlu0 %v986
        %v988 = vpop.xlane.xlu0 %987
        %v989 = vsel %vm801, %v983, -inf
        %990 = vmax.xlane.f32.xlu0 %v989
        %v991 = vpop.xlane.xlu0 %990
        %v992 = vsel %vm801, %v984, -inf
        %993 = vmax.xlane.f32.xlu0 %v992
        %v994 = vpop.xlane.xlu0 %993
        %v995 = vsel %vm801, %v985, -inf
        %996 = vmax.xlane.f32.xlu0 %v995
        %v997 = vpop.xlane.xlu0 %996
        %v998 = vsub.f32 %v982, %v988
        %v999 = vsub.f32 %v983, %v991
        %v1000 = vsub.f32 %v984, %v994
        %v1001 = vsub.f32 %v985, %v997
        %v1002 = vmul.f32 %v998, 1.442695
        %v1003 = vpow.pop %v1002
        %v1004 = vmul.f32 %v999, 1.442695
        %v1005 = vpow.pop %v1004
        %v1006 = vmul.f32 %v1000, 1.442695
        %v1007 = vpow.pop %v1006
        %v1008 = vmul.f32 %v1001, 1.442695
        %v1009 = vpow.pop %v1008
        %v1010 = vmul.f32 %v1003, %v737
        %v1011 = vmul.f32 %v1005, %v738
        %v1012 = vmul.f32 %v1007, %v739
        %v1013 = vmul.f32 %v1009, %v740
        %v1014 = vsel %vm801, %v1010, 0.0
        %1015 = vadd.xlane.f32.xlu0 %v1014
        %v1016 = vpop.xlane.xlu0 %1015
        %v1017 = vsel %vm801, %v1011, 0.0
        %1018 = vadd.xlane.f32.xlu0 %v1017
        %v1019 = vpop.xlane.xlu0 %1018
        %v1020 = vsel %vm801, %v1012, 0.0
        %1021 = vadd.xlane.f32.xlu0 %v1020
        %v1022 = vpop.xlane.xlu0 %1021
        %v1023 = vsel %vm801, %v1013, 0.0
        %1024 = vadd.xlane.f32.xlu0 %v1023
        %v1025 = vpop.xlane.xlu0 %1024
        %v1026 = vrcp.pop %v1016
        %v1027 = vrcp.pop %v1019
        %v1028 = vrcp.pop %v1022
        %v1029 = vrcp.pop %v1025
        %v1030 = vmul.f32 %v1010, %v1026
        %v1031 = vmul.f32 %v1011, %v1027
        %v1032 = vmul.f32 %v1012, %v1028
        %v1033 = vmul.f32 %v1013, %v1029
        %v1034 = vld [vmem:[%s9] sm:$0x1]
        %v1036 = vperm.slane %v1034, 0
        %v1039 = vsel %vm801, %v1030, 0
        %v1042 = vsel %vm801, %v1031, 0
        %v1045 = vsel %vm801, %v1032, 0
        %v1048 = vsel %vm801, %v1033, 0
        %1050 = vmatpush.msra.mxu0 0.0
        %1051 = vmatpush.msra.mxu0 0.0
        %1052 = vmatpush.msra.mxu0 0.0
        %1053 = vmatpush.msra.mxu0 0.0
        %1054 = vmatpush.msra.mxu0 0.0
        %1055 = vmatpush.msra.mxu0 0.0
        %1056 = vmatpush.msra.mxu0 0.0
        %1057 = vmatpush.msra.mxu0 0.0
        %1058 = vmatpush.msra.mxu0 0.0
        %1059 = vmatpush.msra.mxu0 0.0
        %1060 = vmatpush.msra.mxu0 0.0
        %1061 = vmatpush.msra.mxu0 0.0
        %1062 = vmatpush.msra.mxu0 %v903
        %1063 = vmatpush.msra.mxu0 %v900
        %1064 = vmatpush.msra.mxu0 %v897
        %1065 = vmatpush.msra.mxu0 %v894
        %1066 = vmatmul.f32.gmra.mxu0 %v1039
        %v1067 = vpop.f32.mrf.mxu0
        %v1068 = vadd.f32 %v1036, %v1067
        %1069 = vmatmul.f32.gmra.mxu0 %v1042
        %v1070 = vpop.f32.mrf.mxu0
        %v1071 = vadd.f32 %v1036, %v1070
        %1072 = vmatmul.f32.gmra.mxu0 %v1045
        %v1073 = vpop.f32.mrf.mxu0
        %v1074 = vadd.f32 %v1036, %v1073
        %1075 = vmatmul.f32.gmra.mxu0 %v1048
        %v1076 = vpop.f32.mrf.mxu0
        %v1077 = vadd.f32 %v1036, %v1076
        %1078 = vdwg.mxu0
        %v1079 = vld [vmem:[%s10] sm:$0xff]
        %v1080 = vld [vmem:[%s10 + $0x8] sm:$0xff]
        %v1081 = vld [vmem:[%s10 + $0x10] sm:$0xff]
        %v1082 = vld [vmem:[%s10 + $0x18] sm:$0xff]
        %v1083 = vld [vmem:[%s10 + $0x20] sm:$0xff]
        %v1084 = vld [vmem:[%s10 + $0x28] sm:$0xff]
        %v1085 = vld [vmem:[%s10 + $0x30] sm:$0xff]
        %v1086 = vld [vmem:[%s10 + $0x38] sm:$0xff]
        %v1087 = vld [vmem:[%s11] sm:$0x1]
        %v1089 = vperm.slane %v1087, 0
        %v1092 = vsel %vm863, %v1068, 0
        %v1095 = vsel %vm863, %v1071, 0
        %v1098 = vsel %vm863, %v1074, 0
        %v1101 = vsel %vm863, %v1077, 0
        %1103 = vmatpush.msra.mxu0 0.0
        %1104 = vmatpush.msra.mxu0 0.0
        %1105 = vmatpush.msra.mxu0 0.0
        %1106 = vmatpush.msra.mxu0 0.0
        %1107 = vmatpush.msra.mxu0 0.0
        %1108 = vmatpush.msra.mxu0 0.0
        %1109 = vmatpush.msra.mxu0 0.0
        %1110 = vmatpush.msra.mxu0 0.0
        %1111 = vmatpush.msra.mxu0 %v1086
        %1112 = vmatpush.msra.mxu0 %v1085
        %1113 = vmatpush.msra.mxu0 %v1084
        %1114 = vmatpush.msra.mxu0 %v1083
        %1115 = vmatpush.msra.mxu0 %v1082
        %1116 = vmatpush.msra.mxu0 %v1081
        %1117 = vmatpush.msra.mxu0 %v1080
        %1118 = vmatpush.msra.mxu0 %v1079
        %1119 = vmatmul.f32.gmra.mxu0 %v1092
        %v1120 = vpop.f32.mrf.mxu0
        %v1121 = vadd.f32 %v1089, %v1120
        %1122 = vmatmul.f32.gmra.mxu0 %v1095
        %v1123 = vpop.f32.mrf.mxu0
        %v1124 = vadd.f32 %v1089, %v1123
        %1125 = vmatmul.f32.gmra.mxu0 %v1098
        %v1126 = vpop.f32.mrf.mxu0
        %v1127 = vadd.f32 %v1089, %v1126
        %1128 = vmatmul.f32.gmra.mxu0 %v1101
        %v1129 = vpop.f32.mrf.mxu0
        %v1130 = vadd.f32 %v1089, %v1129
        %1131 = vdwg.mxu0
        %vm1132 = vcmp.ge.f32.partialorder %v1121, 0.0
        %vm1133 = vcmp.ge.f32.partialorder %v1124, 0.0
        %vm1134 = vcmp.ge.f32.partialorder %v1127, 0.0
        %vm1135 = vcmp.ge.f32.partialorder %v1130, 0.0
        %v1136 = vmul.f32 %v1121, 0.01
        %v1137 = vmul.f32 %v1124, 0.01
        %v1138 = vmul.f32 %v1127, 0.01
        %v1139 = vmul.f32 %v1130, 0.01
        %v1140 = vsel %vm1132, %v1121, %v1136
        %v1141 = vsel %vm1133, %v1124, %v1137
        %v1142 = vsel %vm1134, %v1127, %v1138
        %v1143 = vsel %vm1135, %v1130, %v1139
        %vm1144 = vcmask 523520
        %v1145 = vsel %vm1144, %v1121, -inf
        %1146 = vmax.xlane.f32.xlu0 %v1145
        %v1147 = vpop.xlane.xlu0 %1146
        %v1148 = vsel %vm1144, %v1124, -inf
        %1149 = vmax.xlane.f32.xlu0 %v1148
        %v1150 = vpop.xlane.xlu0 %1149
        %v1151 = vsel %vm1144, %v1127, -inf
        %1152 = vmax.xlane.f32.xlu0 %v1151
        %v1153 = vpop.xlane.xlu0 %1152
        %v1154 = vsel %vm1144, %v1130, -inf
        %1155 = vmax.xlane.f32.xlu0 %v1154
        %v1156 = vpop.xlane.xlu0 %1155
        %v1157 = vsub.f32 %v1121, %v1147
        %v1158 = vsub.f32 %v1124, %v1150
        %v1159 = vsub.f32 %v1127, %v1153
        %v1160 = vsub.f32 %v1130, %v1156
        %v1161 = vmul.f32 %v1157, 1.442695
        %v1162 = vpow.pop %v1161
        %v1163 = vmul.f32 %v1158, 1.442695
        %v1164 = vpow.pop %v1163
        %v1165 = vmul.f32 %v1159, 1.442695
        %v1166 = vpow.pop %v1165
        %v1167 = vmul.f32 %v1160, 1.442695
        %v1168 = vpow.pop %v1167
        %1173 = vrot.lane.b32.xlu0 %v1162, 96
        %v1174 = vpop.permute.xlu0 %1173
        %1175 = vrot.lane.b32.xlu0 %v1164, 96
        %v1176 = vpop.permute.xlu0 %1175
        %1177 = vrot.lane.b32.xlu0 %v1166, 96
        %v1178 = vpop.permute.xlu0 %1177
        %1179 = vrot.lane.b32.xlu0 %v1168, 96
        %v1180 = vpop.permute.xlu0 %1179
        %v1185 = vsel %vm801, %v1174, 0.0
        %1186 = vadd.xlane.f32.xlu0 %v1185
        %v1187 = vpop.xlane.xlu0 %1186
        %v1188 = vsel %vm801, %v1176, 0.0
        %1189 = vadd.xlane.f32.xlu0 %v1188
        %v1190 = vpop.xlane.xlu0 %1189
        %v1191 = vsel %vm801, %v1178, 0.0
        %1192 = vadd.xlane.f32.xlu0 %v1191
        %v1193 = vpop.xlane.xlu0 %1192
        %v1194 = vsel %vm801, %v1180, 0.0
        %1195 = vadd.xlane.f32.xlu0 %v1194
        %v1196 = vpop.xlane.xlu0 %1195
        %v1197 = vrcp.pop %v1187
        %v1198 = vrcp.pop %v1190
        %v1199 = vrcp.pop %v1193
        %v1200 = vrcp.pop %v1196
        %v1201 = vmul.f32 %v1162, %v1197
        %v1202 = vmul.f32 %v1164, %v1198
        %v1203 = vmul.f32 %v1166, %v1199
        %v1204 = vmul.f32 %v1168, %v1200
        %1209 = vrot.lane.b32.xlu0 %v1201, 96
        %v1210 = vpop.permute.xlu0 %1209
        %1211 = vrot.lane.b32.xlu0 %v1202, 96
        %v1212 = vpop.permute.xlu0 %1211
        %1213 = vrot.lane.b32.xlu0 %v1203, 96
        %v1214 = vpop.permute.xlu0 %1213
        %1215 = vrot.lane.b32.xlu0 %v1204, 96
        %v1216 = vpop.permute.xlu0 %1215
        %v1221 = vmul.f32 %v1140, %v1210
        %v1222 = vmul.f32 %v1141, %v1212
        %v1223 = vmul.f32 %v1142, %v1214
        %v1224 = vmul.f32 %v1143, %v1216
        %v1225 = vld [vmem:[%s12] sm:$0xff]
        %v1226 = vld [vmem:[%s12 + $0x8] sm:$0xff]
        %v1227 = vld [vmem:[%s12 + $0x10] sm:$0xff]
        %v1228 = vld [vmem:[%s12 + $0x18] sm:$0xff]
        %v1229 = vld [vmem:[%s13] sm:$0x1]
        %v1231 = vperm.slane %v1229, 0
        %v1234 = vsel %vm801, %v1221, 0
        %v1237 = vsel %vm801, %v1222, 0
        %v1240 = vsel %vm801, %v1223, 0
        %v1243 = vsel %vm801, %v1224, 0
        %1245 = vmatpush.msra.mxu0 0.0
        %1246 = vmatpush.msra.mxu0 0.0
        %1247 = vmatpush.msra.mxu0 0.0
        %1248 = vmatpush.msra.mxu0 0.0
        %1249 = vmatpush.msra.mxu0 0.0
        %1250 = vmatpush.msra.mxu0 0.0
        %1251 = vmatpush.msra.mxu0 0.0
        %1252 = vmatpush.msra.mxu0 0.0
        %1253 = vmatpush.msra.mxu0 0.0
        %1254 = vmatpush.msra.mxu0 0.0
        %1255 = vmatpush.msra.mxu0 0.0
        %1256 = vmatpush.msra.mxu0 0.0
        %1257 = vmatpush.msra.mxu0 %v1228
        %1258 = vmatpush.msra.mxu0 %v1227
        %1259 = vmatpush.msra.mxu0 %v1226
        %1260 = vmatpush.msra.mxu0 %v1225
        %1261 = vmatmul.f32.gmra.mxu0 %v1234
        %v1262 = vpop.f32.mrf.mxu0
        %v1263 = vadd.f32 %v1231, %v1262
        %1264 = vmatmul.f32.gmra.mxu0 %v1237
        %v1265 = vpop.f32.mrf.mxu0
        %v1266 = vadd.f32 %v1231, %v1265
        %1267 = vmatmul.f32.gmra.mxu0 %v1240
        %v1268 = vpop.f32.mrf.mxu0
        %v1269 = vadd.f32 %v1231, %v1268
        %1270 = vmatmul.f32.gmra.mxu0 %v1243
        %v1271 = vpop.f32.mrf.mxu0
        %v1272 = vadd.f32 %v1231, %v1271
        %1273 = vdwg.mxu0
        %vm1274 = vcmp.ge.f32.partialorder %v1263, 0.0
        %vm1275 = vcmp.ge.f32.partialorder %v1266, 0.0
        %vm1276 = vcmp.ge.f32.partialorder %v1269, 0.0
        %vm1277 = vcmp.ge.f32.partialorder %v1272, 0.0
        %v1278 = vmul.f32 %v1263, 0.01
        %v1279 = vmul.f32 %v1266, 0.01
        %v1280 = vmul.f32 %v1269, 0.01
        %v1281 = vmul.f32 %v1272, 0.01
        %v1282 = vsel %vm1274, %v1263, %v1278
        %v1283 = vsel %vm1275, %v1266, %v1279
        %v1284 = vsel %vm1276, %v1269, %v1280
        %v1285 = vsel %vm1277, %v1272, %v1281
        %v1286 = vld [vmem:[%s14] sm:$0xff]
        %v1287 = vld [vmem:[%s14 + $0x8] sm:$0xff]
        %v1288 = vld [vmem:[%s14 + $0x10] sm:$0xff]
        %v1289 = vld [vmem:[%s14 + $0x18] sm:$0xff]
        %v1290 = vld [vmem:[%s14 + $0x20] sm:$0xff]
        %v1291 = vld [vmem:[%s14 + $0x28] sm:$0xff]
        %v1292 = vld [vmem:[%s15] sm:$0x1]
        %v1294 = vperm.slane %v1292, 0
        %vm1296 = vcmask 392192
        %v1298 = vsel %vm1296, %v1282, 0
        %v1301 = vsel %vm1296, %v1283, 0
        %v1304 = vsel %vm1296, %v1284, 0
        %v1307 = vsel %vm1296, %v1285, 0
        %1309 = vmatpush.msra.mxu0 0.0
        %1310 = vmatpush.msra.mxu0 0.0
        %1311 = vmatpush.msra.mxu0 0.0
        %1312 = vmatpush.msra.mxu0 0.0
        %1313 = vmatpush.msra.mxu0 0.0
        %1314 = vmatpush.msra.mxu0 0.0
        %1315 = vmatpush.msra.mxu0 0.0
        %1316 = vmatpush.msra.mxu0 0.0
        %1317 = vmatpush.msra.mxu0 0.0
        %1318 = vmatpush.msra.mxu0 0.0
        %1319 = vmatpush.msra.mxu0 %v1291
        %1320 = vmatpush.msra.mxu0 %v1290
        %1321 = vmatpush.msra.mxu0 %v1289
        %1322 = vmatpush.msra.mxu0 %v1288
        %1323 = vmatpush.msra.mxu0 %v1287
        %1324 = vmatpush.msra.mxu0 %v1286
        %1325 = vmatmul.f32.gmra.mxu0 %v1298
        %v1326 = vpop.f32.mrf.mxu0
        %v1327 = vadd.f32 %v1294, %v1326
        %1328 = vmatmul.f32.gmra.mxu0 %v1301
        %v1329 = vpop.f32.mrf.mxu0
        %v1330 = vadd.f32 %v1294, %v1329
        %1331 = vmatmul.f32.gmra.mxu0 %v1304
        %v1332 = vpop.f32.mrf.mxu0
        %v1333 = vadd.f32 %v1294, %v1332
        %1334 = vmatmul.f32.gmra.mxu0 %v1307
        %v1335 = vpop.f32.mrf.mxu0
        %v1336 = vadd.f32 %v1294, %v1335
        %1337 = vdwg.mxu0
        %v1338 = vld [vmem:[%s726] sm:$0x3]
        %v1340 = vsel %vm801, %v1338, 0
        %1342 = vmatpush.msra.mxu0 0.0
        %1343 = vmatpush.msra.mxu0 0.0
        %1344 = vmatpush.msra.mxu0 0.0
        %1345 = vmatpush.msra.mxu0 0.0
        %1346 = vmatpush.msra.mxu0 0.0
        %1347 = vmatpush.msra.mxu0 0.0
        %1348 = vmatpush.msra.mxu0 0.0
        %1349 = vmatpush.msra.mxu0 0.0
        %1350 = vmatpush.msra.mxu0 0.0
        %1351 = vmatpush.msra.mxu0 0.0
        %1352 = vmatpush.msra.mxu0 0.0
        %1353 = vmatpush.msra.mxu0 0.0
        %1354 = vmatpush.msra.mxu0 %v1336
        %1355 = vmatpush.msra.mxu0 %v1333
        %1356 = vmatpush.msra.mxu0 %v1330
        %1357 = vmatpush.msra.mxu0 %v1327
        %1358 = vmatmul.f32.gmra.mxu0 %v1340
        %v1359 = vpop.f32.mrf.mxu0
        %v1360 = vadd.f32 0.0, %v1359
        %1361 = vdwg.mxu0
        %s1362 = smul.u32 %s34, 2
        %s1363 = scalar_lea.vmem [#allocation2], %s1362
        %vm1364 = vcmask 254976
        %1365 = vst.msk [vmem:[%s1363] sm:$0x3] %vm1364, %v1360
        %p1366 = scmp.eq.s32.totalorder %s34, 1
        // Predicated region
        $region113: #{gcngat_forward.1} parent=107 // pred_check
          %p1367 = pneg %p1366
        $region114: #{gcngat_forward.1} parent=107 // pred_check_branch
          %1369 = sbr.rel (%p1367) target = $region116
        $region115: #{gcngat_forward.1} parent=107 // pred_region
          %v1370 = vld [vmem:[#allocation2] sm:$0x3]
          %s1371 = scalar_lea.vmem [#allocation2], 2
          %v1372 = vld [vmem:[%s1371] sm:$0x3]
          %1374 = vrot.lane.b32.xlu0 %v1372, 32
          %v1375 = vpop.permute.xlu0 %1374
          %v1377 = vsel %vm801, %v1370, %v1375
          %v1378 = vld [vmem:[%s16] sm:$0xff]
          %v1379 = vld [vmem:[%s16 + $0x8] sm:$0xff]
          %v1380 = vld [vmem:[%s16 + $0x10] sm:$0xff]
          %v1381 = vld [vmem:[%s16 + $0x18] sm:$0xff]
          %v1382 = vld [vmem:[%s16 + $0x20] sm:$0xff]
          %v1383 = vld [vmem:[%s16 + $0x28] sm:$0xff]
          %v1384 = vld [vmem:[%s16 + $0x30] sm:$0xff]
          %v1385 = vld [vmem:[%s16 + $0x38] sm:$0xff]
          %v1386 = vld [vmem:[%s17] sm:$0x1]
          %v1388 = vperm.slane %v1386, 0
          %v1391 = vsel %vm863, %v1377, 0
          %1393 = vmatpush.msra.mxu0 0.0
          %1394 = vmatpush.msra.mxu0 0.0
          %1395 = vmatpush.msra.mxu0 0.0
          %1396 = vmatpush.msra.mxu0 0.0
          %1397 = vmatpush.msra.mxu0 0.0
          %1398 = vmatpush.msra.mxu0 0.0
          %1399 = vmatpush.msra.mxu0 0.0
          %1400 = vmatpush.msra.mxu0 0.0
          %1401 = vmatpush.msra.mxu0 %v1385
          %1402 = vmatpush.msra.mxu0 %v1384
          %1403 = vmatpush.msra.mxu0 %v1383
          %1404 = vmatpush.msra.mxu0 %v1382
          %1405 = vmatpush.msra.mxu0 %v1381
          %1406 = vmatpush.msra.mxu0 %v1380
          %1407 = vmatpush.msra.mxu0 %v1379
          %1408 = vmatpush.msra.mxu0 %v1378
          %1409 = vmatmul.f32.gmra.mxu0 %v1391
          %v1410 = vpop.f32.mrf.mxu0
          %v1411 = vadd.f32 %v1388, %v1410
          %1412 = vdwg.mxu0
          %v1413 = vmax.f32 %v1411, 0.0
          %v1414 = vld [vmem:[%s18] sm:$0xff]
          %v1415 = vld [vmem:[%s18 + $0x8] sm:$0xff]
          %v1416 = vld [vmem:[%s18 + $0x10] sm:$0xff]
          %v1417 = vld [vmem:[%s18 + $0x18] sm:$0xff]
          %v1418 = vld [vmem:[%s19] sm:$0x1]
          %v1420 = vperm.slane %v1418, 0
          %v1423 = vsel %vm801, %v1413, 0
          %1425 = vmatpush.msra.mxu0 0.0
          %1426 = vmatpush.msra.mxu0 0.0
          %1427 = vmatpush.msra.mxu0 0.0
          %1428 = vmatpush.msra.mxu0 0.0
          %1429 = vmatpush.msra.mxu0 0.0
          %1430 = vmatpush.msra.mxu0 0.0
          %1431 = vmatpush.msra.mxu0 0.0
          %1432 = vmatpush.msra.mxu0 0.0
          %1433 = vmatpush.msra.mxu0 0.0
          %1434 = vmatpush.msra.mxu0 0.0
          %1435 = vmatpush.msra.mxu0 0.0
          %1436 = vmatpush.msra.mxu0 0.0
          %1437 = vmatpush.msra.mxu0 %v1417
          %1438 = vmatpush.msra.mxu0 %v1416
          %1439 = vmatpush.msra.mxu0 %v1415
          %1440 = vmatpush.msra.mxu0 %v1414
          %1441 = vmatmul.f32.gmra.mxu0 %v1423
          %v1442 = vpop.f32.mrf.mxu0
          %v1443 = vadd.f32 %v1420, %v1442
          %1444 = vdwg.mxu0
          %v1445 = vmax.f32 %v1443, 0.0
          %v1446 = vld [vmem:[%s20] sm:$0xff]
          %v1447 = vld [vmem:[%s20 + $0x8] sm:$0xff]
          %v1448 = vld [vmem:[%s20 + $0x10] sm:$0xff]
          %v1449 = vld [vmem:[%s20 + $0x18] sm:$0xff]
          %v1450 = vld [vmem:[%s21] sm:$0x1]
          %v1452 = vperm.slane %v1450, 0
          %v1455 = vsel %vm801, %v1445, 0
          %1457 = vmatpush.msra.mxu0 0.0
          %1458 = vmatpush.msra.mxu0 0.0
          %1459 = vmatpush.msra.mxu0 0.0
          %1460 = vmatpush.msra.mxu0 0.0
          %1461 = vmatpush.msra.mxu0 0.0
          %1462 = vmatpush.msra.mxu0 0.0
          %1463 = vmatpush.msra.mxu0 0.0
          %1464 = vmatpush.msra.mxu0 0.0
          %1465 = vmatpush.msra.mxu0 0.0
          %1466 = vmatpush.msra.mxu0 0.0
          %1467 = vmatpush.msra.mxu0 0.0
          %1468 = vmatpush.msra.mxu0 0.0
          %1469 = vmatpush.msra.mxu0 %v1449
          %1470 = vmatpush.msra.mxu0 %v1448
          %1471 = vmatpush.msra.mxu0 %v1447
          %1472 = vmatpush.msra.mxu0 %v1446
          %1473 = vmatmul.f32.gmra.mxu0 %v1455
          %v1474 = vpop.f32.mrf.mxu0
          %v1475 = vadd.f32 %v1452, %v1474
          %1476 = vdwg.mxu0
          %vm1477 = vcmask 9216
          %1478 = vst.msk [vmem:[#allocation3] sm:$0x3] %vm1477, %v1475
        $region116: #{gcngat_forward.1} parent=107 // pred_fallthru
          _
        // Predicated region
        $region117: #{gcngat_forward.1} parent=107 // pred_check
          %p1479 = pneg %p529
        $region118: #{gcngat_forward.1} parent=107 // pred_check_branch
          %1481 = sbr.rel (%p1479) target = $region120
        $region119: #{gcngat_forward.1} parent=107 // pred_region
          %1483 = vsyncadd [#allocation4], 0
          %s1485 = sshll.u32 [#allocation3], 4
          %s1486 = int_to_ptr.vmem [resolvable:$true] %s1485
          %s1487 = sshll.u32 %s22, 4
          %s1488 = int_to_ptr.hbm [resolvable:$true] %s1487
          %1490 = dma.vmem_to_hbm [thread:$0]  %s1486, 32, %s1488, [#allocation4]
        $region120: #{gcngat_forward.1} parent=107 // pred_fallthru
          _
        // Predicated region
        $region121: #{gcngat_forward.1} parent=107 // pred_check
          %p1491 = pneg %p529
        $region122: #{gcngat_forward.1} parent=107 // pred_check_branch
          %1493 = sbr.rel (%p1491) target = $region124
        $region123: #{gcngat_forward.1} parent=107 // pred_region
          %1495 = dma.done [#allocation4], 32
        $region124: #{gcngat_forward.1} parent=107 // pred_fallthru
          _
      $region108: #{gcngat_forward.1} parent=5 // pred_fallthru
        _
      %p1496 = scmp.le.s32.totalorder 2, %s29
      // Predicated region
      $region125: #{gcngat_forward.1} parent=5 // pred_check
        %p1497 = pneg %p1496
      $region126: #{gcngat_forward.1} parent=5 // pred_check_branch
        %1499 = sbr.rel (%p1497) target = $region128
      $region127: #{gcngat_forward.1} parent=5 // pred_region
        %s1500 = ssub.s32 %s29, 2
      $region128: #{gcngat_forward.1} parent=5 // pred_fallthru
        _
    $region6: #{gcngat_forward.1} parent=1 // loop_footer
      %s33 = sadd.s32 1, %s29
    $region7: #{gcngat_forward.1} parent=1 // loop_footer_branch
      %28 = sbr.rel target = $region3
    $region8: #{gcngat_forward.1} parent=1 // loop_exit
      _
    %1501 = vsyncpa [#allocation4], 1
    %s1502 = scalar_lea.sflag [#allocation4], 1
    %1503 = vsyncpa %s1502, 1

</llo_original>
